<compile_context>
chip_gen: v6e
topology: v6e:2x2x1
jax: 0.10.0
libtpu: 0.0.40
codegen_flags: <defaults>
</compile_context>

<pallas_src>
import jax
import jax.numpy as jnp
from jax.experimental import pallas as pl
from jax.experimental.pallas import tpu as pltpu

OUT_PAD = 128  # lane-dense output slab width (col 0 = gender, cols 1..9 = age)


def _fused_heads_kernel(x_ref,
                        w1_ref, b1_ref,
                        w2g_ref, b2g_ref,
                        w2a_ref, b2a_ref,
                        w3g_ref, w3a_ref, b3_ref,
                        out_ref):
    """Both heads fused.  x: (TB, F) f32 (cast to bf16 here).  BN folded into W/b.
       Layer 1: one (F, 512) matmul = [gender 256 | age 256].
       Layer 2: two independent (256,128) matmuls.
       Layer 3: split into two (128, OUT_PAD) matmuls -> lane-dense output,
                no lane concatenate."""
    cd = w1_ref.dtype
    x = x_ref[...].astype(cd)  # in-kernel f32->bf16 cast (hidden under MXU work)

    # Fused Linear(F -> 512) + LeakyReLU(0.2); f32 accumulation.
    h1 = jnp.dot(x, w1_ref[...], preferred_element_type=jnp.float32) + b1_ref[...]
    h1 = jnp.maximum(h1, 0.2 * h1).astype(cd)
    h1_g = h1[:, :256]
    h1_a = h1[:, 256:]

    # Per-head Linear(256 -> 128) + LeakyReLU(0.2).
    h2_g = jnp.dot(h1_g, w2g_ref[...], preferred_element_type=jnp.float32) + b2g_ref[...]
    h2_a = jnp.dot(h1_a, w2a_ref[...], preferred_element_type=jnp.float32) + b2a_ref[...]
    h2_g = jnp.maximum(h2_g, 0.2 * h2_g).astype(cd)
    h2_a = jnp.maximum(h2_a, 0.2 * h2_a).astype(cd)

    # Split final Linear -> (TB, OUT_PAD), lane-dense store (no concatenate).
    y = (jnp.dot(h2_g, w3g_ref[...], preferred_element_type=jnp.float32)
         + jnp.dot(h2_a, w3a_ref[...], preferred_element_type=jnp.float32)
         + b3_ref[...])

    # Sigmoid only on the gender lane (col 0); exp -> EUP, exact reciprocal.
    sig = pl.reciprocal(1.0 + jnp.exp(-y), approx=False)
    lane = jax.lax.broadcasted_iota(jnp.int32, y.shape, 1)
    out_ref[...] = jnp.where(lane == 0, sig, y)


def _round_up(n, m):
    return ((n + m - 1) // m) * m


def _pick_batch_tile(b, max_tile):
    """Small batch -> one minimally padded tile.  Large batch -> largest tile
    <= max_tile that keeps >= 2 grid steps (v7x dual TensorCores) and, when
    possible, divides b exactly so no jnp.pad HBM pass is needed."""
    if b <= 256:
        return _round_up(b, 8)
    half = -(-b // 2)                       # ceil(b / 2)
    cand = min(max_tile, _round_up(half, 8))
    t = cand
    while t > cand // 2 and t >= 8:          # prefer an exact divisor of b
        if b % t == 0:
            return t
        t -= 8
    return cand


def build_fused_params(gender_params, age_params, num_age_classes,
                       compute_dtype=jnp.bfloat16):
    """Fold eval-mode BatchNorm into the Linears and pack both heads."""
    assert 1 + num_age_classes <= OUT_PAD

    def fold(w, b, s, t):  # y = (x@w + b)*s + t  ==  x@(w*s) + (b*s + t)
        return w * s, b * s + t

    gw1, gb1, gs1, gt1, gw2, gb2, gs2, gt2, gw3, gb3 = gender_params
    aw1, ab1, as1, at1, aw2, ab2, as2, at2, aw3, ab3 = age_params

    gw1f, gb1f = fold(gw1, gb1, gs1, gt1)
    aw1f, ab1f = fold(aw1, ab1, as1, at1)
    gw2f, gb2f = fold(gw2, gb2, gs2, gt2)
    aw2f, ab2f = fold(aw2, ab2, as2, at2)

    # Layer 1: concatenate heads along the output dim -> (F, 512).
    w1 = jnp.concatenate([gw1f, aw1f], axis=1)
    b1 = jnp.concatenate([gb1f, ab1f], axis=1)

    # Layer 3: per-head weights, lane-padded to OUT_PAD (col 0 = gender,
    # cols 1..num_age_classes = age); shared lane-padded bias.
    w3g = jnp.zeros((128, OUT_PAD), jnp.float32).at[:, 0:1].set(gw3)
    w3a = jnp.zeros((128, OUT_PAD), jnp.float32).at[:, 1:1 + num_age_classes].set(aw3)
    b3 = jnp.zeros((1, OUT_PAD), jnp.float32)
    b3 = b3.at[:, 0:1].set(gb3)
    b3 = b3.at[:, 1:1 + num_age_classes].set(ab3)

    cd = compute_dtype
    # Biases stay f32 (added after f32 accumulation); matmul operands in bf16.
    return (w1.astype(cd), b1,
            gw2f.astype(cd), gb2f,
            aw2f.astype(cd), ab2f,
            w3g.astype(cd), w3a.astype(cd), b3)


def age_gender_classifier(x, fused_params, num_age_classes=9, batch_tile=512):
    """Forward pass equivalent of ageGenderClassifier.forward -> (gender, age)."""
    b, f = x.shape
    tb = _pick_batch_tile(b, batch_tile)
    b_pad = _round_up(b, tb)
    if b_pad != b:
        x = jnp.pad(x, ((0, b_pad - b), (0, 0)))
    # NOTE: x is NOT cast here; the f32->bf16 cast happens inside the kernel.

    w_bytes = ((f * 512 + 2 * 256 * 128 + 2 * 128 * OUT_PAD) * 2
               + (512 + 2 * 128 + OUT_PAD) * 4)
    cost = pl.CostEstimate(
        flops=2 * b_pad * (f * 512 + 2 * 256 * 128 + 2 * 128 * OUT_PAD),
        transcendentals=b_pad * OUT_PAD,
        bytes_accessed=b_pad * f * x.dtype.itemsize + b_pad * OUT_PAD * 4 + w_bytes,
    )

    out = pl.pallas_call(
        _fused_heads_kernel,
        out_shape=jax.ShapeDtypeStruct((b_pad, OUT_PAD), jnp.float32),
        grid=(b_pad // tb,),
        in_specs=[
            pl.BlockSpec((tb, f), lambda i: (i, 0)),         # x: batch-tiled (f32)
            pl.BlockSpec((f, 512), lambda i: (0, 0)),        # w1 (resident)
            pl.BlockSpec((1, 512), lambda i: (0, 0)),        # b1
            pl.BlockSpec((256, 128), lambda i: (0, 0)),      # w2 gender
            pl.BlockSpec((1, 128), lambda i: (0, 0)),        # b2 gender
            pl.BlockSpec((256, 128), lambda i: (0, 0)),      # w2 age
            pl.BlockSpec((1, 128), lambda i: (0, 0)),        # b2 age
            pl.BlockSpec((128, OUT_PAD), lambda i: (0, 0)),  # w3 gender half
            pl.BlockSpec((128, OUT_PAD), lambda i: (0, 0)),  # w3 age half
            pl.BlockSpec((1, OUT_PAD), lambda i: (0, 0)),    # b3 (shared, padded)
        ],
        out_specs=pl.BlockSpec((tb, OUT_PAD), lambda i: (i, 0)),
        compiler_params=pltpu.CompilerParams(
            dimension_semantics=("parallel",)),
        cost_estimate=cost,
    )(x, *fused_params)

    gender = out[:b, 0:1]
    age = out[:b, 1:1 + num_age_classes]
    return gender, age


def _init_head(key, in_dim, out_dim, eps=1e-5):
    """Deterministic synthetic parameters for one head (PyTorch-style init).
    Returns raw (Linear + eval-mode BN scale/shift) params."""
    ks = jax.random.split(key, 8)

    def lin(kw, kb, fi, fo):
        bound = float(fi) ** -0.5
        w = jax.random.uniform(kw, (fi, fo), jnp.float32, -bound, bound)
        b = jax.random.uniform(kb, (1, fo), jnp.float32, -bound, bound)
        return w, b

    def bn(k, dim):
        k1, k2, k3, k4 = jax.random.split(k, 4)
        gamma = 1.0 + 0.1 * jax.random.normal(k1, (1, dim), jnp.float32)
        beta = 0.1 * jax.random.normal(k2, (1, dim), jnp.float32)
        mean = 0.1 * jax.random.normal(k3, (1, dim), jnp.float32)
        var = 1.0 + 0.1 * jax.random.uniform(k4, (1, dim), jnp.float32)
        scale = gamma * jax.lax.rsqrt(var + eps)
        shift = beta - mean * scale
        return scale, shift

    w1, b1 = lin(ks[0], ks[1], in_dim, 256)
    s1, t1 = bn(ks[2], 256)
    w2, b2 = lin(ks[3], ks[4], 256, 128)
    s2, t2 = bn(ks[5], 128)
    w3, b3 = lin(ks[6], ks[7], 128, out_dim)
    return (w1, b1, s1, t1, w2, b2, s2, t2, w3, b3)


def _head_reference(x, params, apply_sigmoid):
    """Pure-JAX f32 reference matching the PyTorch module (eval mode)."""
    w1, b1, s1, t1, w2, b2, s2, t2, w3, b3 = params
    h = jnp.dot(x, w1) + b1
    h = h * s1 + t1
    h = jnp.where(h > 0, h, 0.2 * h)
    h = jnp.dot(h, w2) + b2
    h = h * s2 + t2
    h = jnp.where(h > 0, h, 0.2 * h)
    y = jnp.dot(h, w3) + b3
    return jax.nn.sigmoid(y) if apply_sigmoid else y


if __name__ == "__main__":
    NUM_UNITS = 512       # fixed by the module's default constructor arg
    NUM_AGE_CLASSES = 9
    BATCH = 8

    key = jax.random.PRNGKey(0)
    k_x, k_age, k_gender = jax.random.split(key, 3)

    x = jax.random.normal(k_x, (BATCH, NUM_UNITS), jnp.float32)
    age_params = _init_head(k_age, NUM_UNITS, NUM_AGE_CLASSES)
    gender_params = _init_head(k_gender, NUM_UNITS, 1)

    fused = build_fused_params(gender_params, age_params, NUM_AGE_CLASSES)
    gender, age = age_gender_classifier(x, fused, NUM_AGE_CLASSES)
    jax.block_until_ready((gender, age))

    gender_ref = _head_reference(x, gender_params, apply_sigmoid=True)
    age_ref = _head_reference(x, age_params, apply_sigmoid=False)

    assert gender.shape == (BATCH, 1) and age.shape == (BATCH, NUM_AGE_CLASSES)
    assert bool(jnp.all((gender >= 0.0) & (gender <= 1.0)))
    assert bool(jnp.allclose(gender, gender_ref, atol=5e-2, rtol=5e-2))
    assert bool(jnp.allclose(age, age_ref, atol=1e-1, rtol=5e-2))
    print("KERNEL_OK")
</pallas_src>

<mosaic_0001>
module attributes {stable_mosaic.version = 11 : i64} {
  func.func @_fused_heads_kernel(%arg0: i32, %arg1: memref<8x512xf32, #tpu.memory_space<vmem>>, %arg2: memref<512x512xbf16, #tpu.memory_space<vmem>>, %arg3: memref<1x512xf32, #tpu.memory_space<vmem>>, %arg4: memref<256x128xbf16, #tpu.memory_space<vmem>>, %arg5: memref<1x128xf32, #tpu.memory_space<vmem>>, %arg6: memref<256x128xbf16, #tpu.memory_space<vmem>>, %arg7: memref<1x128xf32, #tpu.memory_space<vmem>>, %arg8: memref<128x128xbf16, #tpu.memory_space<vmem>>, %arg9: memref<128x128xbf16, #tpu.memory_space<vmem>>, %arg10: memref<1x128xf32, #tpu.memory_space<vmem>>, %arg11: memref<8x128xf32, #tpu.memory_space<vmem>>) attributes {dimension_semantics = [#tpu.dimension_semantics<parallel>], iteration_bounds = array<i64: 1>, scalar_prefetch = 0 : i64, scratch_operands = 0 : i64, tpu.core_type = #tpu.core_type<tc>, window_params = [{transform_indices = @transform_0, window_bounds = array<i64: 8, 512>}, {pipeline_mode = #tpu.pipeline_mode<synchronous>, transform_indices = @transform_1, window_bounds = array<i64: 512, 512>}, {pipeline_mode = #tpu.pipeline_mode<synchronous>, transform_indices = @transform_2, window_bounds = array<i64: 1, 512>}, {pipeline_mode = #tpu.pipeline_mode<synchronous>, transform_indices = @transform_3, window_bounds = array<i64: 256, 128>}, {pipeline_mode = #tpu.pipeline_mode<synchronous>, transform_indices = @transform_4, window_bounds = array<i64: 1, 128>}, {pipeline_mode = #tpu.pipeline_mode<synchronous>, transform_indices = @transform_5, window_bounds = array<i64: 256, 128>}, {pipeline_mode = #tpu.pipeline_mode<synchronous>, transform_indices = @transform_6, window_bounds = array<i64: 1, 128>}, {pipeline_mode = #tpu.pipeline_mode<synchronous>, transform_indices = @transform_7, window_bounds = array<i64: 128, 128>}, {pipeline_mode = #tpu.pipeline_mode<synchronous>, transform_indices = @transform_8, window_bounds = array<i64: 128, 128>}, {pipeline_mode = #tpu.pipeline_mode<synchronous>, transform_indices = @transform_9, window_bounds = array<i64: 1, 128>}, {transform_indices = @transform_10, window_bounds = array<i64: 8, 128>}]} {
    %c0 = arith.constant 0 : index
    %c0_0 = arith.constant 0 : index
    %0 = vector.load %arg1[%c0, %c0_0] : memref<8x512xf32, #tpu.memory_space<vmem>>, vector<8x512xf32>
    %1 = arith.truncf %0 : vector<8x512xf32> to vector<8x512xbf16>
    %c0_1 = arith.constant 0 : index
    %c0_2 = arith.constant 0 : index
    %2 = vector.load %arg2[%c0_1, %c0_2] : memref<512x512xbf16, #tpu.memory_space<vmem>>, vector<512x512xbf16>
    %cst = arith.constant dense<0.000000e+00> : vector<8x512xf32>
    %3 = tpu.matmul %1, %2, %cst {dimension_numbers = #tpu.dot_dimension_numbers<[1], [0], [0], [1], [0, 0, 1, 1], [], []>} : vector<8x512xbf16>, vector<512x512xbf16>, vector<8x512xf32> -> vector<8x512xf32>
    %c0_3 = arith.constant 0 : index
    %c0_4 = arith.constant 0 : index
    %4 = vector.load %arg3[%c0_3, %c0_4] : memref<1x512xf32, #tpu.memory_space<vmem>>, vector<1x512xf32>
    %5 = vector.broadcast %4 : vector<1x512xf32> to vector<8x512xf32>
    %6 = arith.addf %3, %5 : vector<8x512xf32>
    %cst_5 = arith.constant 2.000000e-01 : f32
    %7 = vector.broadcast %cst_5 : f32 to vector<8x512xf32>
    %8 = arith.mulf %7, %6 : vector<8x512xf32>
    %9 = arith.maximumf %6, %8 : vector<8x512xf32>
    %10 = arith.truncf %9 : vector<8x512xf32> to vector<8x512xbf16>
    %11 = vector.extract_strided_slice %10 {offsets = [0, 0], sizes = [8, 256], strides = [1, 1]} : vector<8x512xbf16> to vector<8x256xbf16>
    %12 = vector.extract_strided_slice %10 {offsets = [0, 256], sizes = [8, 256], strides = [1, 1]} : vector<8x512xbf16> to vector<8x256xbf16>
    %c0_6 = arith.constant 0 : index
    %c0_7 = arith.constant 0 : index
    %13 = vector.load %arg4[%c0_6, %c0_7] : memref<256x128xbf16, #tpu.memory_space<vmem>>, vector<256x128xbf16>
    %cst_8 = arith.constant dense<0.000000e+00> : vector<8x128xf32>
    %14 = tpu.matmul %11, %13, %cst_8 {dimension_numbers = #tpu.dot_dimension_numbers<[1], [0], [0], [1], [0, 0, 1, 1], [], []>} : vector<8x256xbf16>, vector<256x128xbf16>, vector<8x128xf32> -> vector<8x128xf32>
    %c0_9 = arith.constant 0 : index
    %c0_10 = arith.constant 0 : index
    %15 = vector.load %arg5[%c0_9, %c0_10] : memref<1x128xf32, #tpu.memory_space<vmem>>, vector<1x128xf32>
    %16 = vector.broadcast %15 : vector<1x128xf32> to vector<8x128xf32>
    %17 = arith.addf %14, %16 : vector<8x128xf32>
    %c0_11 = arith.constant 0 : index
    %c0_12 = arith.constant 0 : index
    %18 = vector.load %arg6[%c0_11, %c0_12] : memref<256x128xbf16, #tpu.memory_space<vmem>>, vector<256x128xbf16>
    %cst_13 = arith.constant dense<0.000000e+00> : vector<8x128xf32>
    %19 = tpu.matmul %12, %18, %cst_13 {dimension_numbers = #tpu.dot_dimension_numbers<[1], [0], [0], [1], [0, 0, 1, 1], [], []>} : vector<8x256xbf16>, vector<256x128xbf16>, vector<8x128xf32> -> vector<8x128xf32>
    %c0_14 = arith.constant 0 : index
    %c0_15 = arith.constant 0 : index
    %20 = vector.load %arg7[%c0_14, %c0_15] : memref<1x128xf32, #tpu.memory_space<vmem>>, vector<1x128xf32>
    %21 = vector.broadcast %20 : vector<1x128xf32> to vector<8x128xf32>
    %22 = arith.addf %19, %21 : vector<8x128xf32>
    %cst_16 = arith.constant 2.000000e-01 : f32
    %23 = vector.broadcast %cst_16 : f32 to vector<8x128xf32>
    %24 = arith.mulf %23, %17 : vector<8x128xf32>
    %25 = arith.maximumf %17, %24 : vector<8x128xf32>
    %26 = arith.truncf %25 : vector<8x128xf32> to vector<8x128xbf16>
    %cst_17 = arith.constant 2.000000e-01 : f32
    %27 = vector.broadcast %cst_17 : f32 to vector<8x128xf32>
    %28 = arith.mulf %27, %22 : vector<8x128xf32>
    %29 = arith.maximumf %22, %28 : vector<8x128xf32>
    %30 = arith.truncf %29 : vector<8x128xf32> to vector<8x128xbf16>
    %c0_18 = arith.constant 0 : index
    %c0_19 = arith.constant 0 : index
    %31 = vector.load %arg8[%c0_18, %c0_19] : memref<128x128xbf16, #tpu.memory_space<vmem>>, vector<128x128xbf16>
    %cst_20 = arith.constant dense<0.000000e+00> : vector<8x128xf32>
    %32 = tpu.matmul %26, %31, %cst_20 {dimension_numbers = #tpu.dot_dimension_numbers<[1], [0], [0], [1], [0, 0, 1, 1], [], []>} : vector<8x128xbf16>, vector<128x128xbf16>, vector<8x128xf32> -> vector<8x128xf32>
    %c0_21 = arith.constant 0 : index
    %c0_22 = arith.constant 0 : index
    %33 = vector.load %arg9[%c0_21, %c0_22] : memref<128x128xbf16, #tpu.memory_space<vmem>>, vector<128x128xbf16>
    %cst_23 = arith.constant dense<0.000000e+00> : vector<8x128xf32>
    %34 = tpu.matmul %30, %33, %cst_23 {dimension_numbers = #tpu.dot_dimension_numbers<[1], [0], [0], [1], [0, 0, 1, 1], [], []>} : vector<8x128xbf16>, vector<128x128xbf16>, vector<8x128xf32> -> vector<8x128xf32>
    %35 = arith.addf %32, %34 : vector<8x128xf32>
    %c0_24 = arith.constant 0 : index
    %c0_25 = arith.constant 0 : index
    %36 = vector.load %arg10[%c0_24, %c0_25] : memref<1x128xf32, #tpu.memory_space<vmem>>, vector<1x128xf32>
    %37 = vector.broadcast %36 : vector<1x128xf32> to vector<8x128xf32>
    %38 = arith.addf %35, %37 : vector<8x128xf32>
    %cst_26 = arith.constant 0.000000e+00 : f32
    %39 = vector.broadcast %cst_26 : f32 to vector<8x128xf32>
    %40 = arith.subf %39, %38 : vector<8x128xf32>
    %41 = math.exp %40 : vector<8x128xf32>
    %cst_27 = arith.constant 1.000000e+00 : f32
    %42 = vector.broadcast %cst_27 : f32 to vector<8x128xf32>
    %43 = arith.addf %42, %41 : vector<8x128xf32>
    %44 = tpu.reciprocal %43 : vector<8x128xf32> -> vector<8x128xf32>
    %45 = tpu.iota {dimensions = array<i32: 1>} : vector<8x128xi32>
    %c0_i32 = arith.constant 0 : i32
    %46 = vector.broadcast %c0_i32 : i32 to vector<8x128xi32>
    %47 = arith.cmpi eq, %45, %46 : vector<8x128xi32>
    %48 = arith.select %47, %44, %38 : vector<8x128xi1>, vector<8x128xf32>
    %c0_28 = arith.constant 0 : index
    %c0_29 = arith.constant 0 : index
    %49 = vector.load %arg11[%c0_28, %c0_29] : memref<8x128xf32, #tpu.memory_space<vmem>>, vector<8x128xf32>
    tpu.vector_store %arg11[%c0_28, %c0_29], %48 {strides = array<i32>} : memref<8x128xf32, #tpu.memory_space<vmem>>, vector<8x128xf32>,
    return
  }
  func.func @transform_0(%arg0: i32) -> (i32, i32) {
    %c0_i32 = arith.constant 0 : i32
    %c0_i32_0 = arith.constant 0 : i32
    return %arg0, %c0_i32 : i32, i32
  }
  func.func @transform_1(%arg0: i32) -> (i32, i32) {
    %c0_i32 = arith.constant 0 : i32
    %c0_i32_0 = arith.constant 0 : i32
    %c0_i32_1 = arith.constant 0 : i32
    return %c0_i32, %c0_i32_0 : i32, i32
  }
  func.func @transform_2(%arg0: i32) -> (i32, i32) {
    %c0_i32 = arith.constant 0 : i32
    %c0_i32_0 = arith.constant 0 : i32
    %c0_i32_1 = arith.constant 0 : i32
    return %c0_i32, %c0_i32_0 : i32, i32
  }
  func.func @transform_3(%arg0: i32) -> (i32, i32) {
    %c0_i32 = arith.constant 0 : i32
    %c0_i32_0 = arith.constant 0 : i32
    %c0_i32_1 = arith.constant 0 : i32
    return %c0_i32, %c0_i32_0 : i32, i32
  }
  func.func @transform_4(%arg0: i32) -> (i32, i32) {
    %c0_i32 = arith.constant 0 : i32
    %c0_i32_0 = arith.constant 0 : i32
    %c0_i32_1 = arith.constant 0 : i32
    return %c0_i32, %c0_i32_0 : i32, i32
  }
  func.func @transform_5(%arg0: i32) -> (i32, i32) {
    %c0_i32 = arith.constant 0 : i32
    %c0_i32_0 = arith.constant 0 : i32
    %c0_i32_1 = arith.constant 0 : i32
    return %c0_i32, %c0_i32_0 : i32, i32
  }
  func.func @transform_6(%arg0: i32) -> (i32, i32) {
    %c0_i32 = arith.constant 0 : i32
    %c0_i32_0 = arith.constant 0 : i32
    %c0_i32_1 = arith.constant 0 : i32
    return %c0_i32, %c0_i32_0 : i32, i32
  }
  func.func @transform_7(%arg0: i32) -> (i32, i32) {
    %c0_i32 = arith.constant 0 : i32
    %c0_i32_0 = arith.constant 0 : i32
    %c0_i32_1 = arith.constant 0 : i32
    return %c0_i32, %c0_i32_0 : i32, i32
  }
  func.func @transform_8(%arg0: i32) -> (i32, i32) {
    %c0_i32 = arith.constant 0 : i32
    %c0_i32_0 = arith.constant 0 : i32
    %c0_i32_1 = arith.constant 0 : i32
    return %c0_i32, %c0_i32_0 : i32, i32
  }
  func.func @transform_9(%arg0: i32) -> (i32, i32) {
    %c0_i32 = arith.constant 0 : i32
    %c0_i32_0 = arith.constant 0 : i32
    %c0_i32_1 = arith.constant 0 : i32
    return %c0_i32, %c0_i32_0 : i32, i32
  }
  func.func @transform_10(%arg0: i32) -> (i32, i32) {
    %c0_i32 = arith.constant 0 : i32
    %c0_i32_0 = arith.constant 0 : i32
    return %arg0, %c0_i32 : i32, i32
  }
}

</mosaic_0001>

<llo_original>
// kernel: tpu_custom_call.1
$region0: #{tpu_custom_call.1}
  #allocation0 [shape = 'u32[]', space=smem, size = 0x4, offset = 0x4, fixed_abs, tag = 'smem constant byte address 0x4 - core index']
  #allocation1 [shape = 'u32[144,128]{1,0:T(1,128)}', space=vmem, size = 0x12000, scoped, tag = 'internal scratch']
  %s0 = inlined_call_operand.hbm [shape: f32[8,512], index: 0, kind: input, shape index: {}]
  %s1 = inlined_call_operand.hbm [shape: bf16[512,512], index: 1, kind: input, shape index: {}]
  %s2 = inlined_call_operand.hbm [shape: f32[1,512], index: 2, kind: input, shape index: {}]
  %s3 = inlined_call_operand.hbm [shape: bf16[256,128], index: 3, kind: input, shape index: {}]
  %s4 = inlined_call_operand.vmem [shape: f32[1,128], index: 4, kind: input, shape index: {}]
  %s5 = inlined_call_operand.hbm [shape: bf16[256,128], index: 5, kind: input, shape index: {}]
  %s6 = inlined_call_operand.vmem [shape: f32[1,128], index: 6, kind: input, shape index: {}]
  %s7 = inlined_call_operand.hbm [shape: bf16[128,128], index: 7, kind: input, shape index: {}]
  %s8 = inlined_call_operand.hbm [shape: bf16[128,128], index: 8, kind: input, shape index: {}]
  %s9 = inlined_call_operand.vmem [shape: f32[1,128], index: 9, kind: input, shape index: {}]
  %s10 = inlined_call_operand.hbm [shape: f32[8,128], index: 10, kind: output, shape index: {}]
  %s11 = sld [smem:[#allocation0]]
  $region78: #{tpu_custom_call.1} parent=0
    _
  %s13 = ssub.s32 1, %s11
  %s14 = scalar_select 0, %s13, %s11
  $region1: #{tpu_custom_call.1} parent=0
    #allocation2 [shape = 'u8[16384]{0}', space=vmem, size = 0x4000, scoped, tag = 'input window, operand 0, single buffered']
    #allocation3 [shape = 's32[1]{0}', space=sflag, size = 0x4, scoped, tag = 'scoped memory for tpu_custom_call.1']
    #allocation4 [shape = 's32[1]{0}', space=sflag, size = 0x4, scoped, tag = 'scoped memory for tpu_custom_call.1']
    #allocation5 [shape = 'u8[524288]{0}', space=vmem, size = 0x80000, scoped, tag = 'input window, operand 1, single buffered']
    #allocation6 [shape = 's32[1]{0}', space=sflag, size = 0x4, scoped, tag = 'scoped memory for tpu_custom_call.1']
    #allocation7 [shape = 'u8[2048]{0}', space=vmem, size = 0x800, scoped, tag = 'input window, operand 2, single buffered']
    #allocation8 [shape = 'u8[65536]{0}', space=vmem, size = 0x10000, scoped, tag = 'input window, operand 3, single buffered']
    #allocation9 [shape = 's32[1]{0}', space=sflag, size = 0x4, scoped, tag = 'scoped memory for tpu_custom_call.1']
    #allocation10 [shape = 'u8[65536]{0}', space=vmem, size = 0x10000, scoped, tag = 'input window, operand 5, single buffered']
    #allocation11 [shape = 'u8[32768]{0}', space=vmem, size = 0x8000, scoped, tag = 'input window, operand 7, single buffered']
    #allocation12 [shape = 's32[1]{0}', space=sflag, size = 0x4, scoped, tag = 'scoped memory for tpu_custom_call.1']
    #allocation13 [shape = 'u8[32768]{0}', space=vmem, size = 0x8000, scoped, tag = 'input window, operand 8, single buffered']
    #allocation14 [shape = 'u8[4096]{0}', space=vmem, size = 0x1000, scoped, tag = 'output window, operand 0, single buffered']
    %15 = vsyncpa [#allocation3], 0
    %16 = vsyncpa [#allocation6], 0
    %17 = vsyncpa [#allocation9], 0
    %18 = vsyncpa [#allocation12], 0
    %19 = vsyncpa [#allocation4], 0
    // Predicated region
    $region2: #{tpu_custom_call.1} parent=1 // pred_check
      _
    $region3: #{tpu_custom_call.1} parent=1 // pred_check_branch
      %21 = sbr.rel (0) target = $region5
    $region4: #{tpu_custom_call.1} parent=1 // pred_region
      %s23 = ssub.s32 512, 512
      %24 = vsyncadd [#allocation3], %s23
      %s26 = sshll.u32 [#allocation2], 4
      %s27 = int_to_ptr.vmem [resolvable:$true] %s26
      %29 = dma.hbm_to_vmem [thread:$0]  %s0, 512, %s27, [#allocation3]
    $region5: #{tpu_custom_call.1} parent=1 // pred_fallthru
      _
    // Predicated region
    $region6: #{tpu_custom_call.1} parent=1 // pred_check
      _
    $region7: #{tpu_custom_call.1} parent=1 // pred_check_branch
      %31 = sbr.rel (0) target = $region9
    $region8: #{tpu_custom_call.1} parent=1 // pred_region
      %s33 = ssub.s32 16384, 16384
      %34 = vsyncadd [#allocation6], %s33
      %s35 = sshll.u32 [#allocation5], 4
      %s36 = int_to_ptr.vmem [resolvable:$true] %s35
      %41 = dma.hbm_to_vmem [thread:$0]  %s1, 16384, %s36, [#allocation6], 256, 256, 16
    $region9: #{tpu_custom_call.1} parent=1 // pred_fallthru
      _
    // Predicated region
    $region10: #{tpu_custom_call.1} parent=1 // pred_check
      _
    $region11: #{tpu_custom_call.1} parent=1 // pred_check_branch
      %43 = sbr.rel (0) target = $region13
    $region12: #{tpu_custom_call.1} parent=1 // pred_region
      %s45 = ssub.s32 64, 64
      %46 = vsyncadd [#allocation6], %s45
      %s48 = sshll.u32 [#allocation7], 4
      %s49 = int_to_ptr.vmem [resolvable:$true] %s48
      %51 = dma.hbm_to_vmem [thread:$0]  %s2, 64, %s49, [#allocation6]
    $region13: #{tpu_custom_call.1} parent=1 // pred_fallthru
      _
    // Predicated region
    $region14: #{tpu_custom_call.1} parent=1 // pred_check
      _
    $region15: #{tpu_custom_call.1} parent=1 // pred_check_branch
      %53 = sbr.rel (0) target = $region17
    $region16: #{tpu_custom_call.1} parent=1 // pred_region
      %s55 = ssub.s32 2048, 2048
      %56 = vsyncadd [#allocation9], %s55
      %s57 = sshll.u32 [#allocation8], 4
      %s58 = int_to_ptr.vmem [resolvable:$true] %s57
      %63 = dma.hbm_to_vmem [thread:$0]  %s3, 2048, %s58, [#allocation9], 64, 64, 4
    $region17: #{tpu_custom_call.1} parent=1 // pred_fallthru
      _
    // Predicated region
    $region18: #{tpu_custom_call.1} parent=1 // pred_check
      _
    $region19: #{tpu_custom_call.1} parent=1 // pred_check_branch
      %65 = sbr.rel (0) target = $region21
    $region20: #{tpu_custom_call.1} parent=1 // pred_region
      _
    $region21: #{tpu_custom_call.1} parent=1 // pred_fallthru
      _
    // Predicated region
    $region22: #{tpu_custom_call.1} parent=1 // pred_check
      _
    $region23: #{tpu_custom_call.1} parent=1 // pred_check_branch
      %67 = sbr.rel (0) target = $region25
    $region24: #{tpu_custom_call.1} parent=1 // pred_region
      %s69 = ssub.s32 2048, 2048
      %70 = vsyncadd [#allocation9], %s69
      %s71 = sshll.u32 [#allocation10], 4
      %s72 = int_to_ptr.vmem [resolvable:$true] %s71
      %77 = dma.hbm_to_vmem [thread:$0]  %s5, 2048, %s72, [#allocation9], 64, 64, 4
    $region25: #{tpu_custom_call.1} parent=1 // pred_fallthru
      _
    // Predicated region
    $region26: #{tpu_custom_call.1} parent=1 // pred_check
      _
    $region27: #{tpu_custom_call.1} parent=1 // pred_check_branch
      %79 = sbr.rel (0) target = $region29
    $region28: #{tpu_custom_call.1} parent=1 // pred_region
      _
    $region29: #{tpu_custom_call.1} parent=1 // pred_fallthru
      _
    // Predicated region
    $region30: #{tpu_custom_call.1} parent=1 // pred_check
      _
    $region31: #{tpu_custom_call.1} parent=1 // pred_check_branch
      %81 = sbr.rel (0) target = $region33
    $region32: #{tpu_custom_call.1} parent=1 // pred_region
      %s83 = ssub.s32 1024, 1024
      %84 = vsyncadd [#allocation12], %s83
      %s85 = sshll.u32 [#allocation11], 4
      %s86 = int_to_ptr.vmem [resolvable:$true] %s85
      %91 = dma.hbm_to_vmem [thread:$0]  %s7, 1024, %s86, [#allocation12], 64, 64, 4
    $region33: #{tpu_custom_call.1} parent=1 // pred_fallthru
      _
    // Predicated region
    $region34: #{tpu_custom_call.1} parent=1 // pred_check
      _
    $region35: #{tpu_custom_call.1} parent=1 // pred_check_branch
      %93 = sbr.rel (0) target = $region37
    $region36: #{tpu_custom_call.1} parent=1 // pred_region
      %s95 = ssub.s32 1024, 1024
      %96 = vsyncadd [#allocation12], %s95
      %s97 = sshll.u32 [#allocation13], 4
      %s98 = int_to_ptr.vmem [resolvable:$true] %s97
      %103 = dma.hbm_to_vmem [thread:$0]  %s8, 1024, %s98, [#allocation12], 64, 64, 4
    $region37: #{tpu_custom_call.1} parent=1 // pred_fallthru
      _
    // Predicated region
    $region38: #{tpu_custom_call.1} parent=1 // pred_check
      _
    $region39: #{tpu_custom_call.1} parent=1 // pred_check_branch
      %105 = sbr.rel (0) target = $region41
    $region40: #{tpu_custom_call.1} parent=1 // pred_region
      _
    $region41: #{tpu_custom_call.1} parent=1 // pred_fallthru
      _
    // Predicated region
    $region42: #{tpu_custom_call.1} parent=1 // pred_check
      _
    $region43: #{tpu_custom_call.1} parent=1 // pred_check_branch
      %107 = sbr.rel (0) target = $region45
    $region44: #{tpu_custom_call.1} parent=1 // pred_region
      %108 = dma.done [#allocation3], 512
    $region45: #{tpu_custom_call.1} parent=1 // pred_fallthru
      _
    // Predicated region
    $region46: #{tpu_custom_call.1} parent=1 // pred_check
      _
    $region47: #{tpu_custom_call.1} parent=1 // pred_check_branch
      %110 = sbr.rel (0) target = $region49
    $region48: #{tpu_custom_call.1} parent=1 // pred_region
      %111 = dma.done [#allocation6], 16384
    $region49: #{tpu_custom_call.1} parent=1 // pred_fallthru
      _
    // Predicated region
    $region50: #{tpu_custom_call.1} parent=1 // pred_check
      _
    $region51: #{tpu_custom_call.1} parent=1 // pred_check_branch
      %113 = sbr.rel (0) target = $region53
    $region52: #{tpu_custom_call.1} parent=1 // pred_region
      %114 = dma.done [#allocation6], 64
    $region53: #{tpu_custom_call.1} parent=1 // pred_fallthru
      _
    // Predicated region
    $region54: #{tpu_custom_call.1} parent=1 // pred_check
      _
    $region55: #{tpu_custom_call.1} parent=1 // pred_check_branch
      %116 = sbr.rel (0) target = $region57
    $region56: #{tpu_custom_call.1} parent=1 // pred_region
      %117 = dma.done [#allocation9], 2048
    $region57: #{tpu_custom_call.1} parent=1 // pred_fallthru
      _
    // Predicated region
    $region58: #{tpu_custom_call.1} parent=1 // pred_check
      _
    $region59: #{tpu_custom_call.1} parent=1 // pred_check_branch
      %119 = sbr.rel (0) target = $region61
    $region60: #{tpu_custom_call.1} parent=1 // pred_region
      %120 = dma.done [#allocation9], 2048
    $region61: #{tpu_custom_call.1} parent=1 // pred_fallthru
      _
    // Predicated region
    $region62: #{tpu_custom_call.1} parent=1 // pred_check
      _
    $region63: #{tpu_custom_call.1} parent=1 // pred_check_branch
      %122 = sbr.rel (0) target = $region65
    $region64: #{tpu_custom_call.1} parent=1 // pred_region
      %123 = dma.done [#allocation12], 1024
    $region65: #{tpu_custom_call.1} parent=1 // pred_fallthru
      _
    // Predicated region
    $region66: #{tpu_custom_call.1} parent=1 // pred_check
      _
    $region67: #{tpu_custom_call.1} parent=1 // pred_check_branch
      %125 = sbr.rel (0) target = $region69
    $region68: #{tpu_custom_call.1} parent=1 // pred_region
      %126 = dma.done [#allocation12], 1024
    $region69: #{tpu_custom_call.1} parent=1 // pred_fallthru
      _
    %v128 = vld [vmem:[#allocation2] sm:$0xff]
    %v129 = vld [vmem:[#allocation2 + $0x8] sm:$0xff]
    %v130 = vld [vmem:[#allocation2 + $0x10] sm:$0xff]
    %v131 = vld [vmem:[#allocation2 + $0x18] sm:$0xff]
    %v132 = vpack.c.bf16 %v128, %v128
    %v133 = vpack.c.bf16 %v129, %v129
    %v134 = vpack.c.bf16 %v130, %v130
    %v135 = vpack.c.bf16 %v131, %v131
    %v136 = vld [vmem:[#allocation5] sm:$0xff]
    %v137 = vld [vmem:[#allocation5 + $0x8] sm:$0xff]
    %v138 = vld [vmem:[#allocation5 + $0x10] sm:$0xff]
    %v139 = vld [vmem:[#allocation5 + $0x18] sm:$0xff]
    %v140 = vld [vmem:[#allocation5 + $0x20] sm:$0xff]
    %v141 = vld [vmem:[#allocation5 + $0x28] sm:$0xff]
    %v142 = vld [vmem:[#allocation5 + $0x30] sm:$0xff]
    %v143 = vld [vmem:[#allocation5 + $0x38] sm:$0xff]
    %v144 = vld [vmem:[#allocation5 + $0x40] sm:$0xff]
    %v145 = vld [vmem:[#allocation5 + $0x48] sm:$0xff]
    %v146 = vld [vmem:[#allocation5 + $0x50] sm:$0xff]
    %v147 = vld [vmem:[#allocation5 + $0x58] sm:$0xff]
    %v148 = vld [vmem:[#allocation5 + $0x60] sm:$0xff]
    %v149 = vld [vmem:[#allocation5 + $0x68] sm:$0xff]
    %v150 = vld [vmem:[#allocation5 + $0x70] sm:$0xff]
    %v151 = vld [vmem:[#allocation5 + $0x78] sm:$0xff]
    %v152 = vld [vmem:[#allocation5 + $0x80] sm:$0xff]
    %v153 = vld [vmem:[#allocation5 + $0x88] sm:$0xff]
    %v154 = vld [vmem:[#allocation5 + $0x90] sm:$0xff]
    %v155 = vld [vmem:[#allocation5 + $0x98] sm:$0xff]
    %v156 = vld [vmem:[#allocation5 + $0xa0] sm:$0xff]
    %v157 = vld [vmem:[#allocation5 + $0xa8] sm:$0xff]
    %v158 = vld [vmem:[#allocation5 + $0xb0] sm:$0xff]
    %v159 = vld [vmem:[#allocation5 + $0xb8] sm:$0xff]
    %v160 = vld [vmem:[#allocation5 + $0xc0] sm:$0xff]
    %v161 = vld [vmem:[#allocation5 + $0xc8] sm:$0xff]
    %v162 = vld [vmem:[#allocation5 + $0xd0] sm:$0xff]
    %v163 = vld [vmem:[#allocation5 + $0xd8] sm:$0xff]
    %v164 = vld [vmem:[#allocation5 + $0xe0] sm:$0xff]
    %v165 = vld [vmem:[#allocation5 + $0xe8] sm:$0xff]
    %v166 = vld [vmem:[#allocation5 + $0xf0] sm:$0xff]
    %v167 = vld [vmem:[#allocation5 + $0xf8] sm:$0xff]
    %v168 = vld [vmem:[#allocation5 + $0x100] sm:$0xff]
    %v169 = vld [vmem:[#allocation5 + $0x108] sm:$0xff]
    %v170 = vld [vmem:[#allocation5 + $0x110] sm:$0xff]
    %v171 = vld [vmem:[#allocation5 + $0x118] sm:$0xff]
    %v172 = vld [vmem:[#allocation5 + $0x120] sm:$0xff]
    %v173 = vld [vmem:[#allocation5 + $0x128] sm:$0xff]
    %v174 = vld [vmem:[#allocation5 + $0x130] sm:$0xff]
    %v175 = vld [vmem:[#allocation5 + $0x138] sm:$0xff]
    %v176 = vld [vmem:[#allocation5 + $0x140] sm:$0xff]
    %v177 = vld [vmem:[#allocation5 + $0x148] sm:$0xff]
    %v178 = vld [vmem:[#allocation5 + $0x150] sm:$0xff]
    %v179 = vld [vmem:[#allocation5 + $0x158] sm:$0xff]
    %v180 = vld [vmem:[#allocation5 + $0x160] sm:$0xff]
    %v181 = vld [vmem:[#allocation5 + $0x168] sm:$0xff]
    %v182 = vld [vmem:[#allocation5 + $0x170] sm:$0xff]
    %v183 = vld [vmem:[#allocation5 + $0x178] sm:$0xff]
    %v184 = vld [vmem:[#allocation5 + $0x180] sm:$0xff]
    %v185 = vld [vmem:[#allocation5 + $0x188] sm:$0xff]
    %v186 = vld [vmem:[#allocation5 + $0x190] sm:$0xff]
    %v187 = vld [vmem:[#allocation5 + $0x198] sm:$0xff]
    %v188 = vld [vmem:[#allocation5 + $0x1a0] sm:$0xff]
    %v189 = vld [vmem:[#allocation5 + $0x1a8] sm:$0xff]
    %v190 = vld [vmem:[#allocation5 + $0x1b0] sm:$0xff]
    %v191 = vld [vmem:[#allocation5 + $0x1b8] sm:$0xff]
    %v192 = vld [vmem:[#allocation5 + $0x1c0] sm:$0xff]
    %v193 = vld [vmem:[#allocation5 + $0x1c8] sm:$0xff]
    %v194 = vld [vmem:[#allocation5 + $0x1d0] sm:$0xff]
    %v195 = vld [vmem:[#allocation5 + $0x1d8] sm:$0xff]
    %v196 = vld [vmem:[#allocation5 + $0x1e0] sm:$0xff]
    %v197 = vld [vmem:[#allocation5 + $0x1e8] sm:$0xff]
    %v198 = vld [vmem:[#allocation5 + $0x1f0] sm:$0xff]
    %v199 = vld [vmem:[#allocation5 + $0x1f8] sm:$0xff]
    %v200 = vld [vmem:[#allocation5 + $0x200] sm:$0xff]
    %v201 = vld [vmem:[#allocation5 + $0x208] sm:$0xff]
    %v202 = vld [vmem:[#allocation5 + $0x210] sm:$0xff]
    %v203 = vld [vmem:[#allocation5 + $0x218] sm:$0xff]
    %v204 = vld [vmem:[#allocation5 + $0x220] sm:$0xff]
    %v205 = vld [vmem:[#allocation5 + $0x228] sm:$0xff]
    %v206 = vld [vmem:[#allocation5 + $0x230] sm:$0xff]
    %v207 = vld [vmem:[#allocation5 + $0x238] sm:$0xff]
    %v208 = vld [vmem:[#allocation5 + $0x240] sm:$0xff]
    %v209 = vld [vmem:[#allocation5 + $0x248] sm:$0xff]
    %v210 = vld [vmem:[#allocation5 + $0x250] sm:$0xff]
    %v211 = vld [vmem:[#allocation5 + $0x258] sm:$0xff]
    %v212 = vld [vmem:[#allocation5 + $0x260] sm:$0xff]
    %v213 = vld [vmem:[#allocation5 + $0x268] sm:$0xff]
    %v214 = vld [vmem:[#allocation5 + $0x270] sm:$0xff]
    %v215 = vld [vmem:[#allocation5 + $0x278] sm:$0xff]
    %v216 = vld [vmem:[#allocation5 + $0x280] sm:$0xff]
    %v217 = vld [vmem:[#allocation5 + $0x288] sm:$0xff]
    %v218 = vld [vmem:[#allocation5 + $0x290] sm:$0xff]
    %v219 = vld [vmem:[#allocation5 + $0x298] sm:$0xff]
    %v220 = vld [vmem:[#allocation5 + $0x2a0] sm:$0xff]
    %v221 = vld [vmem:[#allocation5 + $0x2a8] sm:$0xff]
    %v222 = vld [vmem:[#allocation5 + $0x2b0] sm:$0xff]
    %v223 = vld [vmem:[#allocation5 + $0x2b8] sm:$0xff]
    %v224 = vld [vmem:[#allocation5 + $0x2c0] sm:$0xff]
    %v225 = vld [vmem:[#allocation5 + $0x2c8] sm:$0xff]
    %v226 = vld [vmem:[#allocation5 + $0x2d0] sm:$0xff]
    %v227 = vld [vmem:[#allocation5 + $0x2d8] sm:$0xff]
    %v228 = vld [vmem:[#allocation5 + $0x2e0] sm:$0xff]
    %v229 = vld [vmem:[#allocation5 + $0x2e8] sm:$0xff]
    %v230 = vld [vmem:[#allocation5 + $0x2f0] sm:$0xff]
    %v231 = vld [vmem:[#allocation5 + $0x2f8] sm:$0xff]
    %v232 = vld [vmem:[#allocation5 + $0x300] sm:$0xff]
    %v233 = vld [vmem:[#allocation5 + $0x308] sm:$0xff]
    %v234 = vld [vmem:[#allocation5 + $0x310] sm:$0xff]
    %v235 = vld [vmem:[#allocation5 + $0x318] sm:$0xff]
    %v236 = vld [vmem:[#allocation5 + $0x320] sm:$0xff]
    %v237 = vld [vmem:[#allocation5 + $0x328] sm:$0xff]
    %v238 = vld [vmem:[#allocation5 + $0x330] sm:$0xff]
    %v239 = vld [vmem:[#allocation5 + $0x338] sm:$0xff]
    %v240 = vld [vmem:[#allocation5 + $0x340] sm:$0xff]
    %v241 = vld [vmem:[#allocation5 + $0x348] sm:$0xff]
    %v242 = vld [vmem:[#allocation5 + $0x350] sm:$0xff]
    %v243 = vld [vmem:[#allocation5 + $0x358] sm:$0xff]
    %v244 = vld [vmem:[#allocation5 + $0x360] sm:$0xff]
    %v245 = vld [vmem:[#allocation5 + $0x368] sm:$0xff]
    %v246 = vld [vmem:[#allocation5 + $0x370] sm:$0xff]
    %v247 = vld [vmem:[#allocation5 + $0x378] sm:$0xff]
    %v248 = vld [vmem:[#allocation5 + $0x380] sm:$0xff]
    %v249 = vld [vmem:[#allocation5 + $0x388] sm:$0xff]
    %v250 = vld [vmem:[#allocation5 + $0x390] sm:$0xff]
    %v251 = vld [vmem:[#allocation5 + $0x398] sm:$0xff]
    %v252 = vld [vmem:[#allocation5 + $0x3a0] sm:$0xff]
    %v253 = vld [vmem:[#allocation5 + $0x3a8] sm:$0xff]
    %v254 = vld [vmem:[#allocation5 + $0x3b0] sm:$0xff]
    %v255 = vld [vmem:[#allocation5 + $0x3b8] sm:$0xff]
    %v256 = vld [vmem:[#allocation5 + $0x3c0] sm:$0xff]
    %v257 = vld [vmem:[#allocation5 + $0x3c8] sm:$0xff]
    %v258 = vld [vmem:[#allocation5 + $0x3d0] sm:$0xff]
    %v259 = vld [vmem:[#allocation5 + $0x3d8] sm:$0xff]
    %v260 = vld [vmem:[#allocation5 + $0x3e0] sm:$0xff]
    %v261 = vld [vmem:[#allocation5 + $0x3e8] sm:$0xff]
    %v262 = vld [vmem:[#allocation5 + $0x3f0] sm:$0xff]
    %v263 = vld [vmem:[#allocation5 + $0x3f8] sm:$0xff]
    %v264 = vld [vmem:[#allocation7] sm:$0xf]
    %v266 = vlaneseq
    %v267 = vshrl.u32 %v266, 7
    %v268 = vsub.s32 0, %v267
    %v269 = vrot.slane %v264, %v268
    %v270 = vlaneseq
    %v271 = vshrl.u32 %v270, 7
    %v272 = vsub.s32 1, %v271
    %v273 = vrot.slane %v264, %v272
    %v274 = vlaneseq
    %v275 = vshrl.u32 %v274, 7
    %v276 = vsub.s32 2, %v275
    %v277 = vrot.slane %v264, %v276
    %v278 = vlaneseq
    %v279 = vshrl.u32 %v278, 7
    %v280 = vsub.s32 3, %v279
    %v281 = vrot.slane %v264, %v280
    %v414 = vunpack.c.l.b16 %v136
    %v415 = vunpack.c.h.b16 %v136
    %v416 = vunpack.c.l.b16 %v137
    %v417 = vunpack.c.h.b16 %v137
    %v418 = vunpack.c.l.b16 %v138
    %v419 = vunpack.c.h.b16 %v138
    %v420 = vunpack.c.l.b16 %v139
    %v421 = vunpack.c.h.b16 %v139
    %v422 = vunpack.c.l.b16 %v140
    %v423 = vunpack.c.h.b16 %v140
    %v424 = vunpack.c.l.b16 %v141
    %v425 = vunpack.c.h.b16 %v141
    %v426 = vunpack.c.l.b16 %v142
    %v427 = vunpack.c.h.b16 %v142
    %v428 = vunpack.c.l.b16 %v143
    %v429 = vunpack.c.h.b16 %v143
    %v430 = vunpack.c.l.b16 %v144
    %v431 = vunpack.c.h.b16 %v144
    %v432 = vunpack.c.l.b16 %v145
    %v433 = vunpack.c.h.b16 %v145
    %v434 = vunpack.c.l.b16 %v146
    %v435 = vunpack.c.h.b16 %v146
    %v436 = vunpack.c.l.b16 %v147
    %v437 = vunpack.c.h.b16 %v147
    %v438 = vunpack.c.l.b16 %v148
    %v439 = vunpack.c.h.b16 %v148
    %v440 = vunpack.c.l.b16 %v149
    %v441 = vunpack.c.h.b16 %v149
    %v442 = vunpack.c.l.b16 %v150
    %v443 = vunpack.c.h.b16 %v150
    %v444 = vunpack.c.l.b16 %v151
    %v445 = vunpack.c.h.b16 %v151
    %v446 = vunpack.c.l.b16 %v152
    %v447 = vunpack.c.h.b16 %v152
    %v448 = vunpack.c.l.b16 %v153
    %v449 = vunpack.c.h.b16 %v153
    %v450 = vunpack.c.l.b16 %v154
    %v451 = vunpack.c.h.b16 %v154
    %v452 = vunpack.c.l.b16 %v155
    %v453 = vunpack.c.h.b16 %v155
    %v454 = vunpack.c.l.b16 %v156
    %v455 = vunpack.c.h.b16 %v156
    %v456 = vunpack.c.l.b16 %v157
    %v457 = vunpack.c.h.b16 %v157
    %v458 = vunpack.c.l.b16 %v158
    %v459 = vunpack.c.h.b16 %v158
    %v460 = vunpack.c.l.b16 %v159
    %v461 = vunpack.c.h.b16 %v159
    %v462 = vunpack.c.l.b16 %v160
    %v463 = vunpack.c.h.b16 %v160
    %v464 = vunpack.c.l.b16 %v161
    %v465 = vunpack.c.h.b16 %v161
    %v466 = vunpack.c.l.b16 %v162
    %v467 = vunpack.c.h.b16 %v162
    %v468 = vunpack.c.l.b16 %v163
    %v469 = vunpack.c.h.b16 %v163
    %v470 = vunpack.c.l.b16 %v164
    %v471 = vunpack.c.h.b16 %v164
    %v472 = vunpack.c.l.b16 %v165
    %v473 = vunpack.c.h.b16 %v165
    %v474 = vunpack.c.l.b16 %v166
    %v475 = vunpack.c.h.b16 %v166
    %v476 = vunpack.c.l.b16 %v167
    %v477 = vunpack.c.h.b16 %v167
    %v478 = vunpack.c.l.b16 %v168
    %v479 = vunpack.c.h.b16 %v168
    %v480 = vunpack.c.l.b16 %v169
    %v481 = vunpack.c.h.b16 %v169
    %v482 = vunpack.c.l.b16 %v170
    %v483 = vunpack.c.h.b16 %v170
    %v484 = vunpack.c.l.b16 %v171
    %v485 = vunpack.c.h.b16 %v171
    %v486 = vunpack.c.l.b16 %v172
    %v487 = vunpack.c.h.b16 %v172
    %v488 = vunpack.c.l.b16 %v173
    %v489 = vunpack.c.h.b16 %v173
    %v490 = vunpack.c.l.b16 %v174
    %v491 = vunpack.c.h.b16 %v174
    %v492 = vunpack.c.l.b16 %v175
    %v493 = vunpack.c.h.b16 %v175
    %v494 = vunpack.c.l.b16 %v176
    %v495 = vunpack.c.h.b16 %v176
    %v496 = vunpack.c.l.b16 %v177
    %v497 = vunpack.c.h.b16 %v177
    %v498 = vunpack.c.l.b16 %v178
    %v499 = vunpack.c.h.b16 %v178
    %v500 = vunpack.c.l.b16 %v179
    %v501 = vunpack.c.h.b16 %v179
    %v502 = vunpack.c.l.b16 %v180
    %v503 = vunpack.c.h.b16 %v180
    %v504 = vunpack.c.l.b16 %v181
    %v505 = vunpack.c.h.b16 %v181
    %v506 = vunpack.c.l.b16 %v182
    %v507 = vunpack.c.h.b16 %v182
    %v508 = vunpack.c.l.b16 %v183
    %v509 = vunpack.c.h.b16 %v183
    %v510 = vunpack.c.l.b16 %v184
    %v511 = vunpack.c.h.b16 %v184
    %v512 = vunpack.c.l.b16 %v185
    %v513 = vunpack.c.h.b16 %v185
    %v514 = vunpack.c.l.b16 %v186
    %v515 = vunpack.c.h.b16 %v186
    %v516 = vunpack.c.l.b16 %v187
    %v517 = vunpack.c.h.b16 %v187
    %v518 = vunpack.c.l.b16 %v188
    %v519 = vunpack.c.h.b16 %v188
    %v520 = vunpack.c.l.b16 %v189
    %v521 = vunpack.c.h.b16 %v189
    %v522 = vunpack.c.l.b16 %v190
    %v523 = vunpack.c.h.b16 %v190
    %v524 = vunpack.c.l.b16 %v191
    %v525 = vunpack.c.h.b16 %v191
    %v526 = vunpack.c.l.b16 %v192
    %v527 = vunpack.c.h.b16 %v192
    %v528 = vunpack.c.l.b16 %v193
    %v529 = vunpack.c.h.b16 %v193
    %v530 = vunpack.c.l.b16 %v194
    %v531 = vunpack.c.h.b16 %v194
    %v532 = vunpack.c.l.b16 %v195
    %v533 = vunpack.c.h.b16 %v195
    %v534 = vunpack.c.l.b16 %v196
    %v535 = vunpack.c.h.b16 %v196
    %v536 = vunpack.c.l.b16 %v197
    %v537 = vunpack.c.h.b16 %v197
    %v538 = vunpack.c.l.b16 %v198
    %v539 = vunpack.c.h.b16 %v198
    %v540 = vunpack.c.l.b16 %v199
    %v541 = vunpack.c.h.b16 %v199
    %v542 = vunpack.c.l.b16 %v200
    %v543 = vunpack.c.h.b16 %v200
    %v544 = vunpack.c.l.b16 %v201
    %v545 = vunpack.c.h.b16 %v201
    %v546 = vunpack.c.l.b16 %v202
    %v547 = vunpack.c.h.b16 %v202
    %v548 = vunpack.c.l.b16 %v203
    %v549 = vunpack.c.h.b16 %v203
    %v550 = vunpack.c.l.b16 %v204
    %v551 = vunpack.c.h.b16 %v204
    %v552 = vunpack.c.l.b16 %v205
    %v553 = vunpack.c.h.b16 %v205
    %v554 = vunpack.c.l.b16 %v206
    %v555 = vunpack.c.h.b16 %v206
    %v556 = vunpack.c.l.b16 %v207
    %v557 = vunpack.c.h.b16 %v207
    %v558 = vunpack.c.l.b16 %v208
    %v559 = vunpack.c.h.b16 %v208
    %v560 = vunpack.c.l.b16 %v209
    %v561 = vunpack.c.h.b16 %v209
    %v562 = vunpack.c.l.b16 %v210
    %v563 = vunpack.c.h.b16 %v210
    %v564 = vunpack.c.l.b16 %v211
    %v565 = vunpack.c.h.b16 %v211
    %v566 = vunpack.c.l.b16 %v212
    %v567 = vunpack.c.h.b16 %v212
    %v568 = vunpack.c.l.b16 %v213
    %v569 = vunpack.c.h.b16 %v213
    %v570 = vunpack.c.l.b16 %v214
    %v571 = vunpack.c.h.b16 %v214
    %v572 = vunpack.c.l.b16 %v215
    %v573 = vunpack.c.h.b16 %v215
    %v574 = vunpack.c.l.b16 %v216
    %v575 = vunpack.c.h.b16 %v216
    %v576 = vunpack.c.l.b16 %v217
    %v577 = vunpack.c.h.b16 %v217
    %v578 = vunpack.c.l.b16 %v218
    %v579 = vunpack.c.h.b16 %v218
    %v580 = vunpack.c.l.b16 %v219
    %v581 = vunpack.c.h.b16 %v219
    %v582 = vunpack.c.l.b16 %v220
    %v583 = vunpack.c.h.b16 %v220
    %v584 = vunpack.c.l.b16 %v221
    %v585 = vunpack.c.h.b16 %v221
    %v586 = vunpack.c.l.b16 %v222
    %v587 = vunpack.c.h.b16 %v222
    %v588 = vunpack.c.l.b16 %v223
    %v589 = vunpack.c.h.b16 %v223
    %v590 = vunpack.c.l.b16 %v224
    %v591 = vunpack.c.h.b16 %v224
    %v592 = vunpack.c.l.b16 %v225
    %v593 = vunpack.c.h.b16 %v225
    %v594 = vunpack.c.l.b16 %v226
    %v595 = vunpack.c.h.b16 %v226
    %v596 = vunpack.c.l.b16 %v227
    %v597 = vunpack.c.h.b16 %v227
    %v598 = vunpack.c.l.b16 %v228
    %v599 = vunpack.c.h.b16 %v228
    %v600 = vunpack.c.l.b16 %v229
    %v601 = vunpack.c.h.b16 %v229
    %v602 = vunpack.c.l.b16 %v230
    %v603 = vunpack.c.h.b16 %v230
    %v604 = vunpack.c.l.b16 %v231
    %v605 = vunpack.c.h.b16 %v231
    %v606 = vunpack.c.l.b16 %v232
    %v607 = vunpack.c.h.b16 %v232
    %v608 = vunpack.c.l.b16 %v233
    %v609 = vunpack.c.h.b16 %v233
    %v610 = vunpack.c.l.b16 %v234
    %v611 = vunpack.c.h.b16 %v234
    %v612 = vunpack.c.l.b16 %v235
    %v613 = vunpack.c.h.b16 %v235
    %v614 = vunpack.c.l.b16 %v236
    %v615 = vunpack.c.h.b16 %v236
    %v616 = vunpack.c.l.b16 %v237
    %v617 = vunpack.c.h.b16 %v237
    %v618 = vunpack.c.l.b16 %v238
    %v619 = vunpack.c.h.b16 %v238
    %v620 = vunpack.c.l.b16 %v239
    %v621 = vunpack.c.h.b16 %v239
    %v622 = vunpack.c.l.b16 %v240
    %v623 = vunpack.c.h.b16 %v240
    %v624 = vunpack.c.l.b16 %v241
    %v625 = vunpack.c.h.b16 %v241
    %v626 = vunpack.c.l.b16 %v242
    %v627 = vunpack.c.h.b16 %v242
    %v628 = vunpack.c.l.b16 %v243
    %v629 = vunpack.c.h.b16 %v243
    %v630 = vunpack.c.l.b16 %v244
    %v631 = vunpack.c.h.b16 %v244
    %v632 = vunpack.c.l.b16 %v245
    %v633 = vunpack.c.h.b16 %v245
    %v634 = vunpack.c.l.b16 %v246
    %v635 = vunpack.c.h.b16 %v246
    %v636 = vunpack.c.l.b16 %v247
    %v637 = vunpack.c.h.b16 %v247
    %v638 = vunpack.c.l.b16 %v248
    %v639 = vunpack.c.h.b16 %v248
    %v640 = vunpack.c.l.b16 %v249
    %v641 = vunpack.c.h.b16 %v249
    %v642 = vunpack.c.l.b16 %v250
    %v643 = vunpack.c.h.b16 %v250
    %v644 = vunpack.c.l.b16 %v251
    %v645 = vunpack.c.h.b16 %v251
    %v646 = vunpack.c.l.b16 %v252
    %v647 = vunpack.c.h.b16 %v252
    %v648 = vunpack.c.l.b16 %v253
    %v649 = vunpack.c.h.b16 %v253
    %v650 = vunpack.c.l.b16 %v254
    %v651 = vunpack.c.h.b16 %v254
    %v652 = vunpack.c.l.b16 %v255
    %v653 = vunpack.c.h.b16 %v255
    %v654 = vunpack.c.l.b16 %v256
    %v655 = vunpack.c.h.b16 %v256
    %v656 = vunpack.c.l.b16 %v257
    %v657 = vunpack.c.h.b16 %v257
    %v658 = vunpack.c.l.b16 %v258
    %v659 = vunpack.c.h.b16 %v258
    %v660 = vunpack.c.l.b16 %v259
    %v661 = vunpack.c.h.b16 %v259
    %v662 = vunpack.c.l.b16 %v260
    %v663 = vunpack.c.h.b16 %v260
    %v664 = vunpack.c.l.b16 %v261
    %v665 = vunpack.c.h.b16 %v261
    %v666 = vunpack.c.l.b16 %v262
    %v667 = vunpack.c.h.b16 %v262
    %v668 = vunpack.c.l.b16 %v263
    %v669 = vunpack.c.h.b16 %v263
    %v670 = vpack.c.b16 %v418, %v414
    %v671 = vpack.c.b16 %v419, %v415
    %v672 = vpack.c.b16 %v420, %v416
    %v673 = vpack.c.b16 %v421, %v417
    %v674 = vpack.c.b16 %v426, %v422
    %v675 = vpack.c.b16 %v427, %v423
    %v676 = vpack.c.b16 %v428, %v424
    %v677 = vpack.c.b16 %v429, %v425
    %v678 = vpack.c.b16 %v434, %v430
    %v679 = vpack.c.b16 %v435, %v431
    %v680 = vpack.c.b16 %v436, %v432
    %v681 = vpack.c.b16 %v437, %v433
    %v682 = vpack.c.b16 %v442, %v438
    %v683 = vpack.c.b16 %v443, %v439
    %v684 = vpack.c.b16 %v444, %v440
    %v685 = vpack.c.b16 %v445, %v441
    %v686 = vpack.c.b16 %v450, %v446
    %v687 = vpack.c.b16 %v451, %v447
    %v688 = vpack.c.b16 %v452, %v448
    %v689 = vpack.c.b16 %v453, %v449
    %v690 = vpack.c.b16 %v458, %v454
    %v691 = vpack.c.b16 %v459, %v455
    %v692 = vpack.c.b16 %v460, %v456
    %v693 = vpack.c.b16 %v461, %v457
    %v694 = vpack.c.b16 %v466, %v462
    %v695 = vpack.c.b16 %v467, %v463
    %v696 = vpack.c.b16 %v468, %v464
    %v697 = vpack.c.b16 %v469, %v465
    %v698 = vpack.c.b16 %v474, %v470
    %v699 = vpack.c.b16 %v475, %v471
    %v700 = vpack.c.b16 %v476, %v472
    %v701 = vpack.c.b16 %v477, %v473
    %v702 = vpack.c.b16 %v482, %v478
    %v703 = vpack.c.b16 %v483, %v479
    %v704 = vpack.c.b16 %v484, %v480
    %v705 = vpack.c.b16 %v485, %v481
    %v706 = vpack.c.b16 %v490, %v486
    %v707 = vpack.c.b16 %v491, %v487
    %v708 = vpack.c.b16 %v492, %v488
    %v709 = vpack.c.b16 %v493, %v489
    %v710 = vpack.c.b16 %v498, %v494
    %v711 = vpack.c.b16 %v499, %v495
    %v712 = vpack.c.b16 %v500, %v496
    %v713 = vpack.c.b16 %v501, %v497
    %v714 = vpack.c.b16 %v506, %v502
    %v715 = vpack.c.b16 %v507, %v503
    %v716 = vpack.c.b16 %v508, %v504
    %v717 = vpack.c.b16 %v509, %v505
    %v718 = vpack.c.b16 %v514, %v510
    %v719 = vpack.c.b16 %v515, %v511
    %v720 = vpack.c.b16 %v516, %v512
    %v721 = vpack.c.b16 %v517, %v513
    %v722 = vpack.c.b16 %v522, %v518
    %v723 = vpack.c.b16 %v523, %v519
    %v724 = vpack.c.b16 %v524, %v520
    %v725 = vpack.c.b16 %v525, %v521
    %v726 = vpack.c.b16 %v530, %v526
    %v727 = vpack.c.b16 %v531, %v527
    %v728 = vpack.c.b16 %v532, %v528
    %v729 = vpack.c.b16 %v533, %v529
    %v730 = vpack.c.b16 %v538, %v534
    %v731 = vpack.c.b16 %v539, %v535
    %v732 = vpack.c.b16 %v540, %v536
    %v733 = vpack.c.b16 %v541, %v537
    %v734 = vpack.c.b16 %v546, %v542
    %v735 = vpack.c.b16 %v547, %v543
    %v736 = vpack.c.b16 %v548, %v544
    %v737 = vpack.c.b16 %v549, %v545
    %v738 = vpack.c.b16 %v554, %v550
    %v739 = vpack.c.b16 %v555, %v551
    %v740 = vpack.c.b16 %v556, %v552
    %v741 = vpack.c.b16 %v557, %v553
    %v742 = vpack.c.b16 %v562, %v558
    %v743 = vpack.c.b16 %v563, %v559
    %v744 = vpack.c.b16 %v564, %v560
    %v745 = vpack.c.b16 %v565, %v561
    %v746 = vpack.c.b16 %v570, %v566
    %v747 = vpack.c.b16 %v571, %v567
    %v748 = vpack.c.b16 %v572, %v568
    %v749 = vpack.c.b16 %v573, %v569
    %v750 = vpack.c.b16 %v578, %v574
    %v751 = vpack.c.b16 %v579, %v575
    %v752 = vpack.c.b16 %v580, %v576
    %v753 = vpack.c.b16 %v581, %v577
    %v754 = vpack.c.b16 %v586, %v582
    %v755 = vpack.c.b16 %v587, %v583
    %v756 = vpack.c.b16 %v588, %v584
    %v757 = vpack.c.b16 %v589, %v585
    %v758 = vpack.c.b16 %v594, %v590
    %v759 = vpack.c.b16 %v595, %v591
    %v760 = vpack.c.b16 %v596, %v592
    %v761 = vpack.c.b16 %v597, %v593
    %v762 = vpack.c.b16 %v602, %v598
    %v763 = vpack.c.b16 %v603, %v599
    %v764 = vpack.c.b16 %v604, %v600
    %v765 = vpack.c.b16 %v605, %v601
    %v766 = vpack.c.b16 %v610, %v606
    %v767 = vpack.c.b16 %v611, %v607
    %v768 = vpack.c.b16 %v612, %v608
    %v769 = vpack.c.b16 %v613, %v609
    %v770 = vpack.c.b16 %v618, %v614
    %v771 = vpack.c.b16 %v619, %v615
    %v772 = vpack.c.b16 %v620, %v616
    %v773 = vpack.c.b16 %v621, %v617
    %v774 = vpack.c.b16 %v626, %v622
    %v775 = vpack.c.b16 %v627, %v623
    %v776 = vpack.c.b16 %v628, %v624
    %v777 = vpack.c.b16 %v629, %v625
    %v778 = vpack.c.b16 %v634, %v630
    %v779 = vpack.c.b16 %v635, %v631
    %v780 = vpack.c.b16 %v636, %v632
    %v781 = vpack.c.b16 %v637, %v633
    %v782 = vpack.c.b16 %v642, %v638
    %v783 = vpack.c.b16 %v643, %v639
    %v784 = vpack.c.b16 %v644, %v640
    %v785 = vpack.c.b16 %v645, %v641
    %v786 = vpack.c.b16 %v650, %v646
    %v787 = vpack.c.b16 %v651, %v647
    %v788 = vpack.c.b16 %v652, %v648
    %v789 = vpack.c.b16 %v653, %v649
    %v790 = vpack.c.b16 %v658, %v654
    %v791 = vpack.c.b16 %v659, %v655
    %v792 = vpack.c.b16 %v660, %v656
    %v793 = vpack.c.b16 %v661, %v657
    %v794 = vpack.c.b16 %v666, %v662
    %v795 = vpack.c.b16 %v667, %v663
    %v796 = vpack.c.b16 %v668, %v664
    %v797 = vpack.c.b16 %v669, %v665
    %926 = vmatprep.subr.bf16.mxu0 %v699
    %927 = vmatpush1.bf16.msra.mxu0 %v698
    %928 = vmatprep.subr.bf16.mxu0 %v695
    %929 = vmatpush1.bf16.msra.mxu0 %v694
    %930 = vmatprep.subr.bf16.mxu0 %v691
    %931 = vmatpush1.bf16.msra.mxu0 %v690
    %932 = vmatprep.subr.bf16.mxu0 %v687
    %933 = vmatpush1.bf16.msra.mxu0 %v686
    %934 = vmatprep.subr.bf16.mxu0 %v683
    %935 = vmatpush1.bf16.msra.mxu0 %v682
    %936 = vmatprep.subr.bf16.mxu0 %v679
    %937 = vmatpush1.bf16.msra.mxu0 %v678
    %938 = vmatprep.subr.bf16.mxu0 %v675
    %939 = vmatpush1.bf16.msra.mxu0 %v674
    %940 = vmatprep.subr.bf16.mxu0 %v671
    %941 = vmatpush1.bf16.msra.mxu0 %v670
    %942 = vmatprep.subr.bf16.mxu0 %v731
    %943 = vmatpush2.bf16.msra.mxu0 %v730
    %944 = vmatprep.subr.bf16.mxu0 %v727
    %945 = vmatpush2.bf16.msra.mxu0 %v726
    %946 = vmatprep.subr.bf16.mxu0 %v723
    %947 = vmatpush2.bf16.msra.mxu0 %v722
    %948 = vmatprep.subr.bf16.mxu0 %v719
    %949 = vmatpush2.bf16.msra.mxu0 %v718
    %950 = vmatprep.subr.bf16.mxu0 %v715
    %951 = vmatpush2.bf16.msra.mxu0 %v714
    %952 = vmatprep.subr.bf16.mxu0 %v711
    %953 = vmatpush2.bf16.msra.mxu0 %v710
    %954 = vmatprep.subr.bf16.mxu0 %v707
    %955 = vmatpush2.bf16.msra.mxu0 %v706
    %956 = vmatprep.subr.bf16.mxu0 %v703
    %957 = vmatpush2.bf16.msra.mxu0 %v702
    %958 = vmatprep.mubr.bf16.mxu0 %v133
    %959 = vmatmul.mubr.bf16.gmra.mxu0 %v132
    %v960 = vpop.f32.mrf.mxu0
    %v961 = vadd.f32 %v269, %v960
    %v962 = vpop.f32.mrf.mxu0
    %v963 = vadd.f32 %v273, %v962
    %v964 = vpop.f32.mrf.mxu0
    %v965 = vpop.f32.mrf.mxu0
    %966 = vdwg.mxu0
    %967 = vmatprep.subr.bf16.mxu0 %v763
    %968 = vmatpush1.bf16.msra.mxu0 %v762
    %969 = vmatprep.subr.bf16.mxu0 %v759
    %970 = vmatpush1.bf16.msra.mxu0 %v758
    %971 = vmatprep.subr.bf16.mxu0 %v755
    %972 = vmatpush1.bf16.msra.mxu0 %v754
    %973 = vmatprep.subr.bf16.mxu0 %v751
    %974 = vmatpush1.bf16.msra.mxu0 %v750
    %975 = vmatprep.subr.bf16.mxu0 %v747
    %976 = vmatpush1.bf16.msra.mxu0 %v746
    %977 = vmatprep.subr.bf16.mxu0 %v743
    %978 = vmatpush1.bf16.msra.mxu0 %v742
    %979 = vmatprep.subr.bf16.mxu0 %v739
    %980 = vmatpush1.bf16.msra.mxu0 %v738
    %981 = vmatprep.subr.bf16.mxu0 %v735
    %982 = vmatpush1.bf16.msra.mxu0 %v734
    %983 = vmatprep.subr.bf16.mxu0 %v795
    %984 = vmatpush2.bf16.msra.mxu0 %v794
    %985 = vmatprep.subr.bf16.mxu0 %v791
    %986 = vmatpush2.bf16.msra.mxu0 %v790
    %987 = vmatprep.subr.bf16.mxu0 %v787
    %988 = vmatpush2.bf16.msra.mxu0 %v786
    %989 = vmatprep.subr.bf16.mxu0 %v783
    %990 = vmatpush2.bf16.msra.mxu0 %v782
    %991 = vmatprep.subr.bf16.mxu0 %v779
    %992 = vmatpush2.bf16.msra.mxu0 %v778
    %993 = vmatprep.subr.bf16.mxu0 %v775
    %994 = vmatpush2.bf16.msra.mxu0 %v774
    %995 = vmatprep.subr.bf16.mxu0 %v771
    %996 = vmatpush2.bf16.msra.mxu0 %v770
    %997 = vmatprep.subr.bf16.mxu0 %v767
    %998 = vmatpush2.bf16.msra.mxu0 %v766
    %999 = vmatprep.mubr.bf16.mxu0 %v135
    %1000 = vmatmul.mubr.bf16.gmra.mxu0 %v134
    %v1001 = vpop.f32.mrf.mxu0
    %v1002 = vadd.f32 %v961, %v1001
    %v1003 = vpop.f32.mrf.mxu0
    %v1004 = vadd.f32 %v963, %v1003
    %v1005 = vpop.f32.mrf.mxu0
    %v1006 = vpop.f32.mrf.mxu0
    %1007 = vdwg.mxu0
    %1008 = vmatprep.subr.bf16.mxu0 %v701
    %1009 = vmatpush1.bf16.msra.mxu0 %v700
    %1010 = vmatprep.subr.bf16.mxu0 %v697
    %1011 = vmatpush1.bf16.msra.mxu0 %v696
    %1012 = vmatprep.subr.bf16.mxu0 %v693
    %1013 = vmatpush1.bf16.msra.mxu0 %v692
    %1014 = vmatprep.subr.bf16.mxu0 %v689
    %1015 = vmatpush1.bf16.msra.mxu0 %v688
    %1016 = vmatprep.subr.bf16.mxu0 %v685
    %1017 = vmatpush1.bf16.msra.mxu0 %v684
    %1018 = vmatprep.subr.bf16.mxu0 %v681
    %1019 = vmatpush1.bf16.msra.mxu0 %v680
    %1020 = vmatprep.subr.bf16.mxu0 %v677
    %1021 = vmatpush1.bf16.msra.mxu0 %v676
    %1022 = vmatprep.subr.bf16.mxu0 %v673
    %1023 = vmatpush1.bf16.msra.mxu0 %v672
    %1024 = vmatprep.subr.bf16.mxu0 %v733
    %1025 = vmatpush2.bf16.msra.mxu0 %v732
    %1026 = vmatprep.subr.bf16.mxu0 %v729
    %1027 = vmatpush2.bf16.msra.mxu0 %v728
    %1028 = vmatprep.subr.bf16.mxu0 %v725
    %1029 = vmatpush2.bf16.msra.mxu0 %v724
    %1030 = vmatprep.subr.bf16.mxu0 %v721
    %1031 = vmatpush2.bf16.msra.mxu0 %v720
    %1032 = vmatprep.subr.bf16.mxu0 %v717
    %1033 = vmatpush2.bf16.msra.mxu0 %v716
    %1034 = vmatprep.subr.bf16.mxu0 %v713
    %1035 = vmatpush2.bf16.msra.mxu0 %v712
    %1036 = vmatprep.subr.bf16.mxu0 %v709
    %1037 = vmatpush2.bf16.msra.mxu0 %v708
    %1038 = vmatprep.subr.bf16.mxu0 %v705
    %1039 = vmatpush2.bf16.msra.mxu0 %v704
    %1040 = vmatprep.mubr.bf16.mxu0 %v133
    %1041 = vmatmul.mubr.bf16.gmra.mxu0 %v132
    %v1042 = vpop.f32.mrf.mxu0
    %v1043 = vadd.f32 %v277, %v1042
    %v1044 = vpop.f32.mrf.mxu0
    %v1045 = vadd.f32 %v281, %v1044
    %v1046 = vpop.f32.mrf.mxu0
    %v1047 = vpop.f32.mrf.mxu0
    %1048 = vdwg.mxu0
    %1049 = vmatprep.subr.bf16.mxu0 %v765
    %1050 = vmatpush1.bf16.msra.mxu0 %v764
    %1051 = vmatprep.subr.bf16.mxu0 %v761
    %1052 = vmatpush1.bf16.msra.mxu0 %v760
    %1053 = vmatprep.subr.bf16.mxu0 %v757
    %1054 = vmatpush1.bf16.msra.mxu0 %v756
    %1055 = vmatprep.subr.bf16.mxu0 %v753
    %1056 = vmatpush1.bf16.msra.mxu0 %v752
    %1057 = vmatprep.subr.bf16.mxu0 %v749
    %1058 = vmatpush1.bf16.msra.mxu0 %v748
    %1059 = vmatprep.subr.bf16.mxu0 %v745
    %1060 = vmatpush1.bf16.msra.mxu0 %v744
    %1061 = vmatprep.subr.bf16.mxu0 %v741
    %1062 = vmatpush1.bf16.msra.mxu0 %v740
    %1063 = vmatprep.subr.bf16.mxu0 %v737
    %1064 = vmatpush1.bf16.msra.mxu0 %v736
    %1065 = vmatprep.subr.bf16.mxu0 %v797
    %1066 = vmatpush2.bf16.msra.mxu0 %v796
    %1067 = vmatprep.subr.bf16.mxu0 %v793
    %1068 = vmatpush2.bf16.msra.mxu0 %v792
    %1069 = vmatprep.subr.bf16.mxu0 %v789
    %1070 = vmatpush2.bf16.msra.mxu0 %v788
    %1071 = vmatprep.subr.bf16.mxu0 %v785
    %1072 = vmatpush2.bf16.msra.mxu0 %v784
    %1073 = vmatprep.subr.bf16.mxu0 %v781
    %1074 = vmatpush2.bf16.msra.mxu0 %v780
    %1075 = vmatprep.subr.bf16.mxu0 %v777
    %1076 = vmatpush2.bf16.msra.mxu0 %v776
    %1077 = vmatprep.subr.bf16.mxu0 %v773
    %1078 = vmatpush2.bf16.msra.mxu0 %v772
    %1079 = vmatprep.subr.bf16.mxu0 %v769
    %1080 = vmatpush2.bf16.msra.mxu0 %v768
    %1081 = vmatprep.mubr.bf16.mxu0 %v135
    %1082 = vmatmul.mubr.bf16.gmra.mxu0 %v134
    %v1083 = vpop.f32.mrf.mxu0
    %v1084 = vadd.f32 %v1043, %v1083
    %v1085 = vpop.f32.mrf.mxu0
    %v1086 = vadd.f32 %v1045, %v1085
    %v1087 = vpop.f32.mrf.mxu0
    %v1088 = vpop.f32.mrf.mxu0
    %1089 = vdwg.mxu0
    %v1090 = vmul.f32 %v1002, 0.2
    %v1091 = vmul.f32 %v1004, 0.2
    %v1092 = vmul.f32 %v1084, 0.2
    %v1093 = vmul.f32 %v1086, 0.2
    %v1094 = vmax.f32 %v1002, %v1090
    %v1095 = vmax.f32 %v1004, %v1091
    %v1096 = vmax.f32 %v1084, %v1092
    %v1097 = vmax.f32 %v1086, %v1093
    %v1098 = vpack.c.bf16 %v1094, %v1094
    %v1099 = vpack.c.bf16 %v1095, %v1095
    %v1100 = vpack.c.bf16 %v1096, %v1096
    %v1101 = vpack.c.bf16 %v1097, %v1097
    %v1102 = vld [vmem:[#allocation8] sm:$0xf]
    %v1103 = vld [vmem:[#allocation8 + $0x4] sm:$0xf]
    %v1104 = vld [vmem:[#allocation8 + $0x8] sm:$0xf]
    %v1105 = vld [vmem:[#allocation8 + $0xc] sm:$0xf]
    %v1106 = vld [vmem:[#allocation8 + $0x10] sm:$0xf]
    %v1107 = vld [vmem:[#allocation8 + $0x14] sm:$0xf]
    %v1108 = vld [vmem:[#allocation8 + $0x18] sm:$0xf]
    %v1109 = vld [vmem:[#allocation8 + $0x1c] sm:$0xf]
    %v1110 = vld [vmem:[#allocation8 + $0x20] sm:$0xf]
    %v1111 = vld [vmem:[#allocation8 + $0x24] sm:$0xf]
    %v1112 = vld [vmem:[#allocation8 + $0x28] sm:$0xf]
    %v1113 = vld [vmem:[#allocation8 + $0x2c] sm:$0xf]
    %v1114 = vld [vmem:[#allocation8 + $0x30] sm:$0xf]
    %v1115 = vld [vmem:[#allocation8 + $0x34] sm:$0xf]
    %v1116 = vld [vmem:[#allocation8 + $0x38] sm:$0xf]
    %v1117 = vld [vmem:[#allocation8 + $0x3c] sm:$0xf]
    %v1118 = vld [vmem:[#allocation8 + $0x40] sm:$0xf]
    %v1119 = vld [vmem:[#allocation8 + $0x44] sm:$0xf]
    %v1120 = vld [vmem:[#allocation8 + $0x48] sm:$0xf]
    %v1121 = vld [vmem:[#allocation8 + $0x4c] sm:$0xf]
    %v1122 = vld [vmem:[#allocation8 + $0x50] sm:$0xf]
    %v1123 = vld [vmem:[#allocation8 + $0x54] sm:$0xf]
    %v1124 = vld [vmem:[#allocation8 + $0x58] sm:$0xf]
    %v1125 = vld [vmem:[#allocation8 + $0x5c] sm:$0xf]
    %v1126 = vld [vmem:[#allocation8 + $0x60] sm:$0xf]
    %v1127 = vld [vmem:[#allocation8 + $0x64] sm:$0xf]
    %v1128 = vld [vmem:[#allocation8 + $0x68] sm:$0xf]
    %v1129 = vld [vmem:[#allocation8 + $0x6c] sm:$0xf]
    %v1130 = vld [vmem:[#allocation8 + $0x70] sm:$0xf]
    %v1131 = vld [vmem:[#allocation8 + $0x74] sm:$0xf]
    %v1132 = vld [vmem:[#allocation8 + $0x78] sm:$0xf]
    %v1133 = vld [vmem:[#allocation8 + $0x7c] sm:$0xf]
    %v1134 = vld [vmem:[%s4] sm:$0x1]
    %v1136 = vlaneseq
    %v1137 = vshrl.u32 %v1136, 7
    %v1138 = vsub.s32 0, %v1137
    %v1139 = vrot.slane %v1134, %v1138
    %v1173 = vunpack.c.l.b16 %v1102
    %v1174 = vunpack.c.l.b16 %v1103
    %v1175 = vunpack.c.l.b16 %v1104
    %v1176 = vunpack.c.l.b16 %v1105
    %v1177 = vunpack.c.l.b16 %v1106
    %v1178 = vunpack.c.l.b16 %v1107
    %v1179 = vunpack.c.l.b16 %v1108
    %v1180 = vunpack.c.l.b16 %v1109
    %v1181 = vunpack.c.l.b16 %v1110
    %v1182 = vunpack.c.l.b16 %v1111
    %v1183 = vunpack.c.l.b16 %v1112
    %v1184 = vunpack.c.l.b16 %v1113
    %v1185 = vunpack.c.l.b16 %v1114
    %v1186 = vunpack.c.l.b16 %v1115
    %v1187 = vunpack.c.l.b16 %v1116
    %v1188 = vunpack.c.l.b16 %v1117
    %v1189 = vunpack.c.l.b16 %v1118
    %v1190 = vunpack.c.l.b16 %v1119
    %v1191 = vunpack.c.l.b16 %v1120
    %v1192 = vunpack.c.l.b16 %v1121
    %v1193 = vunpack.c.l.b16 %v1122
    %v1194 = vunpack.c.l.b16 %v1123
    %v1195 = vunpack.c.l.b16 %v1124
    %v1196 = vunpack.c.l.b16 %v1125
    %v1197 = vunpack.c.l.b16 %v1126
    %v1198 = vunpack.c.l.b16 %v1127
    %v1199 = vunpack.c.l.b16 %v1128
    %v1200 = vunpack.c.l.b16 %v1129
    %v1201 = vunpack.c.l.b16 %v1130
    %v1202 = vunpack.c.l.b16 %v1131
    %v1203 = vunpack.c.l.b16 %v1132
    %v1204 = vunpack.c.l.b16 %v1133
    %v1205 = vpack.c.b16 %v1174, %v1173
    %v1206 = vpack.c.b16 %v1176, %v1175
    %v1207 = vpack.c.b16 %v1178, %v1177
    %v1208 = vpack.c.b16 %v1180, %v1179
    %v1209 = vpack.c.b16 %v1182, %v1181
    %v1210 = vpack.c.b16 %v1184, %v1183
    %v1211 = vpack.c.b16 %v1186, %v1185
    %v1212 = vpack.c.b16 %v1188, %v1187
    %v1213 = vpack.c.b16 %v1190, %v1189
    %v1214 = vpack.c.b16 %v1192, %v1191
    %v1215 = vpack.c.b16 %v1194, %v1193
    %v1216 = vpack.c.b16 %v1196, %v1195
    %v1217 = vpack.c.b16 %v1198, %v1197
    %v1218 = vpack.c.b16 %v1200, %v1199
    %v1219 = vpack.c.b16 %v1202, %v1201
    %v1220 = vpack.c.b16 %v1204, %v1203
    %1237 = vmatprep.subr.bf16.mxu0 0
    %1238 = vmatpush1.bf16.msra.mxu0 %v1212
    %1239 = vmatprep.subr.bf16.mxu0 0
    %1240 = vmatpush1.bf16.msra.mxu0 %v1211
    %1241 = vmatprep.subr.bf16.mxu0 0
    %1242 = vmatpush1.bf16.msra.mxu0 %v1210
    %1243 = vmatprep.subr.bf16.mxu0 0
    %1244 = vmatpush1.bf16.msra.mxu0 %v1209
    %1245 = vmatprep.subr.bf16.mxu0 0
    %1246 = vmatpush1.bf16.msra.mxu0 %v1208
    %1247 = vmatprep.subr.bf16.mxu0 0
    %1248 = vmatpush1.bf16.msra.mxu0 %v1207
    %1249 = vmatprep.subr.bf16.mxu0 0
    %1250 = vmatpush1.bf16.msra.mxu0 %v1206
    %1251 = vmatprep.subr.bf16.mxu0 0
    %1252 = vmatpush1.bf16.msra.mxu0 %v1205
    %1253 = vmatprep.subr.bf16.mxu0 0
    %1254 = vmatpush2.bf16.msra.mxu0 %v1220
    %1255 = vmatprep.subr.bf16.mxu0 0
    %1256 = vmatpush2.bf16.msra.mxu0 %v1219
    %1257 = vmatprep.subr.bf16.mxu0 0
    %1258 = vmatpush2.bf16.msra.mxu0 %v1218
    %1259 = vmatprep.subr.bf16.mxu0 0
    %1260 = vmatpush2.bf16.msra.mxu0 %v1217
    %1261 = vmatprep.subr.bf16.mxu0 0
    %1262 = vmatpush2.bf16.msra.mxu0 %v1216
    %1263 = vmatprep.subr.bf16.mxu0 0
    %1264 = vmatpush2.bf16.msra.mxu0 %v1215
    %1265 = vmatprep.subr.bf16.mxu0 0
    %1266 = vmatpush2.bf16.msra.mxu0 %v1214
    %1267 = vmatprep.subr.bf16.mxu0 0
    %1268 = vmatpush2.bf16.msra.mxu0 %v1213
    %1269 = vmatprep.mubr.bf16.mxu0 %v1099
    %1270 = vmatmul.mubr.bf16.gmra.mxu0 %v1098
    %v1271 = vpop.f32.mrf.mxu0
    %v1272 = vadd.f32 %v1139, %v1271
    %v1273 = vpop.f32.mrf.mxu0
    %v1274 = vpop.f32.mrf.mxu0
    %v1275 = vpop.f32.mrf.mxu0
    %1276 = vdwg.mxu0
    %v1277 = vld [vmem:[#allocation10] sm:$0xf]
    %v1278 = vld [vmem:[#allocation10 + $0x4] sm:$0xf]
    %v1279 = vld [vmem:[#allocation10 + $0x8] sm:$0xf]
    %v1280 = vld [vmem:[#allocation10 + $0xc] sm:$0xf]
    %v1281 = vld [vmem:[#allocation10 + $0x10] sm:$0xf]
    %v1282 = vld [vmem:[#allocation10 + $0x14] sm:$0xf]
    %v1283 = vld [vmem:[#allocation10 + $0x18] sm:$0xf]
    %v1284 = vld [vmem:[#allocation10 + $0x1c] sm:$0xf]
    %v1285 = vld [vmem:[#allocation10 + $0x20] sm:$0xf]
    %v1286 = vld [vmem:[#allocation10 + $0x24] sm:$0xf]
    %v1287 = vld [vmem:[#allocation10 + $0x28] sm:$0xf]
    %v1288 = vld [vmem:[#allocation10 + $0x2c] sm:$0xf]
    %v1289 = vld [vmem:[#allocation10 + $0x30] sm:$0xf]
    %v1290 = vld [vmem:[#allocation10 + $0x34] sm:$0xf]
    %v1291 = vld [vmem:[#allocation10 + $0x38] sm:$0xf]
    %v1292 = vld [vmem:[#allocation10 + $0x3c] sm:$0xf]
    %v1293 = vld [vmem:[#allocation10 + $0x40] sm:$0xf]
    %v1294 = vld [vmem:[#allocation10 + $0x44] sm:$0xf]
    %v1295 = vld [vmem:[#allocation10 + $0x48] sm:$0xf]
    %v1296 = vld [vmem:[#allocation10 + $0x4c] sm:$0xf]
    %v1297 = vld [vmem:[#allocation10 + $0x50] sm:$0xf]
    %v1298 = vld [vmem:[#allocation10 + $0x54] sm:$0xf]
    %v1299 = vld [vmem:[#allocation10 + $0x58] sm:$0xf]
    %v1300 = vld [vmem:[#allocation10 + $0x5c] sm:$0xf]
    %v1301 = vld [vmem:[#allocation10 + $0x60] sm:$0xf]
    %v1302 = vld [vmem:[#allocation10 + $0x64] sm:$0xf]
    %v1303 = vld [vmem:[#allocation10 + $0x68] sm:$0xf]
    %v1304 = vld [vmem:[#allocation10 + $0x6c] sm:$0xf]
    %v1305 = vld [vmem:[#allocation10 + $0x70] sm:$0xf]
    %v1306 = vld [vmem:[#allocation10 + $0x74] sm:$0xf]
    %v1307 = vld [vmem:[#allocation10 + $0x78] sm:$0xf]
    %v1308 = vld [vmem:[#allocation10 + $0x7c] sm:$0xf]
    %v1309 = vld [vmem:[%s6] sm:$0x1]
    %v1311 = vlaneseq
    %v1312 = vshrl.u32 %v1311, 7
    %v1313 = vsub.s32 0, %v1312
    %v1314 = vrot.slane %v1309, %v1313
    %v1348 = vunpack.c.l.b16 %v1277
    %v1349 = vunpack.c.l.b16 %v1278
    %v1350 = vunpack.c.l.b16 %v1279
    %v1351 = vunpack.c.l.b16 %v1280
    %v1352 = vunpack.c.l.b16 %v1281
    %v1353 = vunpack.c.l.b16 %v1282
    %v1354 = vunpack.c.l.b16 %v1283
    %v1355 = vunpack.c.l.b16 %v1284
    %v1356 = vunpack.c.l.b16 %v1285
    %v1357 = vunpack.c.l.b16 %v1286
    %v1358 = vunpack.c.l.b16 %v1287
    %v1359 = vunpack.c.l.b16 %v1288
    %v1360 = vunpack.c.l.b16 %v1289
    %v1361 = vunpack.c.l.b16 %v1290
    %v1362 = vunpack.c.l.b16 %v1291
    %v1363 = vunpack.c.l.b16 %v1292
    %v1364 = vunpack.c.l.b16 %v1293
    %v1365 = vunpack.c.l.b16 %v1294
    %v1366 = vunpack.c.l.b16 %v1295
    %v1367 = vunpack.c.l.b16 %v1296
    %v1368 = vunpack.c.l.b16 %v1297
    %v1369 = vunpack.c.l.b16 %v1298
    %v1370 = vunpack.c.l.b16 %v1299
    %v1371 = vunpack.c.l.b16 %v1300
    %v1372 = vunpack.c.l.b16 %v1301
    %v1373 = vunpack.c.l.b16 %v1302
    %v1374 = vunpack.c.l.b16 %v1303
    %v1375 = vunpack.c.l.b16 %v1304
    %v1376 = vunpack.c.l.b16 %v1305
    %v1377 = vunpack.c.l.b16 %v1306
    %v1378 = vunpack.c.l.b16 %v1307
    %v1379 = vunpack.c.l.b16 %v1308
    %v1380 = vpack.c.b16 %v1349, %v1348
    %v1381 = vpack.c.b16 %v1351, %v1350
    %v1382 = vpack.c.b16 %v1353, %v1352
    %v1383 = vpack.c.b16 %v1355, %v1354
    %v1384 = vpack.c.b16 %v1357, %v1356
    %v1385 = vpack.c.b16 %v1359, %v1358
    %v1386 = vpack.c.b16 %v1361, %v1360
    %v1387 = vpack.c.b16 %v1363, %v1362
    %v1388 = vpack.c.b16 %v1365, %v1364
    %v1389 = vpack.c.b16 %v1367, %v1366
    %v1390 = vpack.c.b16 %v1369, %v1368
    %v1391 = vpack.c.b16 %v1371, %v1370
    %v1392 = vpack.c.b16 %v1373, %v1372
    %v1393 = vpack.c.b16 %v1375, %v1374
    %v1394 = vpack.c.b16 %v1377, %v1376
    %v1395 = vpack.c.b16 %v1379, %v1378
    %1412 = vmatprep.subr.bf16.mxu0 0
    %1413 = vmatpush1.bf16.msra.mxu0 %v1387
    %1414 = vmatprep.subr.bf16.mxu0 0
    %1415 = vmatpush1.bf16.msra.mxu0 %v1386
    %1416 = vmatprep.subr.bf16.mxu0 0
    %1417 = vmatpush1.bf16.msra.mxu0 %v1385
    %1418 = vmatprep.subr.bf16.mxu0 0
    %1419 = vmatpush1.bf16.msra.mxu0 %v1384
    %1420 = vmatprep.subr.bf16.mxu0 0
    %1421 = vmatpush1.bf16.msra.mxu0 %v1383
    %1422 = vmatprep.subr.bf16.mxu0 0
    %1423 = vmatpush1.bf16.msra.mxu0 %v1382
    %1424 = vmatprep.subr.bf16.mxu0 0
    %1425 = vmatpush1.bf16.msra.mxu0 %v1381
    %1426 = vmatprep.subr.bf16.mxu0 0
    %1427 = vmatpush1.bf16.msra.mxu0 %v1380
    %1428 = vmatprep.subr.bf16.mxu0 0
    %1429 = vmatpush2.bf16.msra.mxu0 %v1395
    %1430 = vmatprep.subr.bf16.mxu0 0
    %1431 = vmatpush2.bf16.msra.mxu0 %v1394
    %1432 = vmatprep.subr.bf16.mxu0 0
    %1433 = vmatpush2.bf16.msra.mxu0 %v1393
    %1434 = vmatprep.subr.bf16.mxu0 0
    %1435 = vmatpush2.bf16.msra.mxu0 %v1392
    %1436 = vmatprep.subr.bf16.mxu0 0
    %1437 = vmatpush2.bf16.msra.mxu0 %v1391
    %1438 = vmatprep.subr.bf16.mxu0 0
    %1439 = vmatpush2.bf16.msra.mxu0 %v1390
    %1440 = vmatprep.subr.bf16.mxu0 0
    %1441 = vmatpush2.bf16.msra.mxu0 %v1389
    %1442 = vmatprep.subr.bf16.mxu0 0
    %1443 = vmatpush2.bf16.msra.mxu0 %v1388
    %1444 = vmatprep.mubr.bf16.mxu0 %v1101
    %1445 = vmatmul.mubr.bf16.gmra.mxu0 %v1100
    %v1446 = vpop.f32.mrf.mxu0
    %v1447 = vadd.f32 %v1314, %v1446
    %v1448 = vpop.f32.mrf.mxu0
    %v1449 = vpop.f32.mrf.mxu0
    %v1450 = vpop.f32.mrf.mxu0
    %1451 = vdwg.mxu0
    %v1452 = vmul.f32 %v1272, 0.2
    %v1453 = vmax.f32 %v1272, %v1452
    %v1454 = vpack.c.bf16 %v1453, %v1453
    %v1455 = vmul.f32 %v1447, 0.2
    %v1456 = vmax.f32 %v1447, %v1455
    %v1457 = vpack.c.bf16 %v1456, %v1456
    %v1458 = vld [vmem:[#allocation11] sm:$0xf]
    %v1459 = vld [vmem:[#allocation11 + $0x4] sm:$0xf]
    %v1460 = vld [vmem:[#allocation11 + $0x8] sm:$0xf]
    %v1461 = vld [vmem:[#allocation11 + $0xc] sm:$0xf]
    %v1462 = vld [vmem:[#allocation11 + $0x10] sm:$0xf]
    %v1463 = vld [vmem:[#allocation11 + $0x14] sm:$0xf]
    %v1464 = vld [vmem:[#allocation11 + $0x18] sm:$0xf]
    %v1465 = vld [vmem:[#allocation11 + $0x1c] sm:$0xf]
    %v1466 = vld [vmem:[#allocation11 + $0x20] sm:$0xf]
    %v1467 = vld [vmem:[#allocation11 + $0x24] sm:$0xf]
    %v1468 = vld [vmem:[#allocation11 + $0x28] sm:$0xf]
    %v1469 = vld [vmem:[#allocation11 + $0x2c] sm:$0xf]
    %v1470 = vld [vmem:[#allocation11 + $0x30] sm:$0xf]
    %v1471 = vld [vmem:[#allocation11 + $0x34] sm:$0xf]
    %v1472 = vld [vmem:[#allocation11 + $0x38] sm:$0xf]
    %v1473 = vld [vmem:[#allocation11 + $0x3c] sm:$0xf]
    %v1474 = vld [vmem:[#allocation13] sm:$0xf]
    %v1475 = vld [vmem:[#allocation13 + $0x4] sm:$0xf]
    %v1476 = vld [vmem:[#allocation13 + $0x8] sm:$0xf]
    %v1477 = vld [vmem:[#allocation13 + $0xc] sm:$0xf]
    %v1478 = vld [vmem:[#allocation13 + $0x10] sm:$0xf]
    %v1479 = vld [vmem:[#allocation13 + $0x14] sm:$0xf]
    %v1480 = vld [vmem:[#allocation13 + $0x18] sm:$0xf]
    %v1481 = vld [vmem:[#allocation13 + $0x1c] sm:$0xf]
    %v1482 = vld [vmem:[#allocation13 + $0x20] sm:$0xf]
    %v1483 = vld [vmem:[#allocation13 + $0x24] sm:$0xf]
    %v1484 = vld [vmem:[#allocation13 + $0x28] sm:$0xf]
    %v1485 = vld [vmem:[#allocation13 + $0x2c] sm:$0xf]
    %v1486 = vld [vmem:[#allocation13 + $0x30] sm:$0xf]
    %v1487 = vld [vmem:[#allocation13 + $0x34] sm:$0xf]
    %v1488 = vld [vmem:[#allocation13 + $0x38] sm:$0xf]
    %v1489 = vld [vmem:[#allocation13 + $0x3c] sm:$0xf]
    %v1506 = vunpack.c.l.b16 %v1474
    %v1507 = vunpack.c.l.b16 %v1475
    %v1508 = vunpack.c.l.b16 %v1476
    %v1509 = vunpack.c.l.b16 %v1477
    %v1510 = vunpack.c.l.b16 %v1478
    %v1511 = vunpack.c.l.b16 %v1479
    %v1512 = vunpack.c.l.b16 %v1480
    %v1513 = vunpack.c.l.b16 %v1481
    %v1514 = vunpack.c.l.b16 %v1482
    %v1515 = vunpack.c.l.b16 %v1483
    %v1516 = vunpack.c.l.b16 %v1484
    %v1517 = vunpack.c.l.b16 %v1485
    %v1518 = vunpack.c.l.b16 %v1486
    %v1519 = vunpack.c.l.b16 %v1487
    %v1520 = vunpack.c.l.b16 %v1488
    %v1521 = vunpack.c.l.b16 %v1489
    %v1522 = vpack.c.b16 %v1507, %v1506
    %v1523 = vpack.c.b16 %v1509, %v1508
    %v1524 = vpack.c.b16 %v1511, %v1510
    %v1525 = vpack.c.b16 %v1513, %v1512
    %v1526 = vpack.c.b16 %v1515, %v1514
    %v1527 = vpack.c.b16 %v1517, %v1516
    %v1528 = vpack.c.b16 %v1519, %v1518
    %v1529 = vpack.c.b16 %v1521, %v1520
    %1538 = vmatprep.subr.bf16.mxu0 0
    %1539 = vmatpush1.bf16.msra.mxu0 %v1529
    %1540 = vmatprep.subr.bf16.mxu0 0
    %1541 = vmatpush1.bf16.msra.mxu0 %v1528
    %1542 = vmatprep.subr.bf16.mxu0 0
    %1543 = vmatpush1.bf16.msra.mxu0 %v1527
    %1544 = vmatprep.subr.bf16.mxu0 0
    %1545 = vmatpush1.bf16.msra.mxu0 %v1526
    %1546 = vmatprep.subr.bf16.mxu0 0
    %1547 = vmatpush1.bf16.msra.mxu0 %v1525
    %1548 = vmatprep.subr.bf16.mxu0 0
    %1549 = vmatpush1.bf16.msra.mxu0 %v1524
    %1550 = vmatprep.subr.bf16.mxu0 0
    %1551 = vmatpush1.bf16.msra.mxu0 %v1523
    %1552 = vmatprep.subr.bf16.mxu0 0
    %1553 = vmatpush1.bf16.msra.mxu0 %v1522
    %1554 = vmatprep.subr.bf16.mxu0 0
    %1555 = vmatpush2.bf16.msra.mxu0 0
    %1556 = vmatprep.subr.bf16.mxu0 0
    %1557 = vmatpush2.bf16.msra.mxu0 0
    %1558 = vmatprep.subr.bf16.mxu0 0
    %1559 = vmatpush2.bf16.msra.mxu0 0
    %1560 = vmatprep.subr.bf16.mxu0 0
    %1561 = vmatpush2.bf16.msra.mxu0 0
    %1562 = vmatprep.subr.bf16.mxu0 0
    %1563 = vmatpush2.bf16.msra.mxu0 0
    %1564 = vmatprep.subr.bf16.mxu0 0
    %1565 = vmatpush2.bf16.msra.mxu0 0
    %1566 = vmatprep.subr.bf16.mxu0 0
    %1567 = vmatpush2.bf16.msra.mxu0 0
    %1568 = vmatprep.subr.bf16.mxu0 0
    %1569 = vmatpush2.bf16.msra.mxu0 0
    %1570 = vmatprep.mubr.bf16.mxu0 0
    %1571 = vmatmul.mubr.bf16.gmra.mxu0 %v1457
    %v1572 = vpop.f32.mrf.mxu0
    %v1573 = vadd.f32 0.0, %v1572
    %v1574 = vpop.f32.mrf.mxu0
    %v1575 = vpop.f32.mrf.mxu0
    %v1576 = vpop.f32.mrf.mxu0
    %1577 = vdwg.mxu0
    %v1594 = vunpack.c.l.b16 %v1458
    %v1595 = vunpack.c.l.b16 %v1459
    %v1596 = vunpack.c.l.b16 %v1460
    %v1597 = vunpack.c.l.b16 %v1461
    %v1598 = vunpack.c.l.b16 %v1462
    %v1599 = vunpack.c.l.b16 %v1463
    %v1600 = vunpack.c.l.b16 %v1464
    %v1601 = vunpack.c.l.b16 %v1465
    %v1602 = vunpack.c.l.b16 %v1466
    %v1603 = vunpack.c.l.b16 %v1467
    %v1604 = vunpack.c.l.b16 %v1468
    %v1605 = vunpack.c.l.b16 %v1469
    %v1606 = vunpack.c.l.b16 %v1470
    %v1607 = vunpack.c.l.b16 %v1471
    %v1608 = vunpack.c.l.b16 %v1472
    %v1609 = vunpack.c.l.b16 %v1473
    %v1610 = vpack.c.b16 %v1595, %v1594
    %v1611 = vpack.c.b16 %v1597, %v1596
    %v1612 = vpack.c.b16 %v1599, %v1598
    %v1613 = vpack.c.b16 %v1601, %v1600
    %v1614 = vpack.c.b16 %v1603, %v1602
    %v1615 = vpack.c.b16 %v1605, %v1604
    %v1616 = vpack.c.b16 %v1607, %v1606
    %v1617 = vpack.c.b16 %v1609, %v1608
    %1626 = vmatprep.subr.bf16.mxu0 0
    %1627 = vmatpush1.bf16.msra.mxu0 %v1617
    %1628 = vmatprep.subr.bf16.mxu0 0
    %1629 = vmatpush1.bf16.msra.mxu0 %v1616
    %1630 = vmatprep.subr.bf16.mxu0 0
    %1631 = vmatpush1.bf16.msra.mxu0 %v1615
    %1632 = vmatprep.subr.bf16.mxu0 0
    %1633 = vmatpush1.bf16.msra.mxu0 %v1614
    %1634 = vmatprep.subr.bf16.mxu0 0
    %1635 = vmatpush1.bf16.msra.mxu0 %v1613
    %1636 = vmatprep.subr.bf16.mxu0 0
    %1637 = vmatpush1.bf16.msra.mxu0 %v1612
    %1638 = vmatprep.subr.bf16.mxu0 0
    %1639 = vmatpush1.bf16.msra.mxu0 %v1611
    %1640 = vmatprep.subr.bf16.mxu0 0
    %1641 = vmatpush1.bf16.msra.mxu0 %v1610
    %1642 = vmatprep.subr.bf16.mxu0 0
    %1643 = vmatpush2.bf16.msra.mxu0 0
    %1644 = vmatprep.subr.bf16.mxu0 0
    %1645 = vmatpush2.bf16.msra.mxu0 0
    %1646 = vmatprep.subr.bf16.mxu0 0
    %1647 = vmatpush2.bf16.msra.mxu0 0
    %1648 = vmatprep.subr.bf16.mxu0 0
    %1649 = vmatpush2.bf16.msra.mxu0 0
    %1650 = vmatprep.subr.bf16.mxu0 0
    %1651 = vmatpush2.bf16.msra.mxu0 0
    %1652 = vmatprep.subr.bf16.mxu0 0
    %1653 = vmatpush2.bf16.msra.mxu0 0
    %1654 = vmatprep.subr.bf16.mxu0 0
    %1655 = vmatpush2.bf16.msra.mxu0 0
    %1656 = vmatprep.subr.bf16.mxu0 0
    %1657 = vmatpush2.bf16.msra.mxu0 0
    %1658 = vmatprep.mubr.bf16.mxu0 0
    %1659 = vmatmul.mubr.bf16.gmra.mxu0 %v1454
    %v1660 = vpop.f32.mrf.mxu0
    %v1661 = vadd.f32 %v1573, %v1660
    %v1662 = vpop.f32.mrf.mxu0
    %v1663 = vpop.f32.mrf.mxu0
    %v1664 = vpop.f32.mrf.mxu0
    %1665 = vdwg.mxu0
    %v1666 = vld [vmem:[%s9] sm:$0x1]
    %v1668 = vlaneseq
    %v1669 = vshrl.u32 %v1668, 7
    %v1670 = vsub.s32 0, %v1669
    %v1671 = vrot.slane %v1666, %v1670
    %v1673 = vadd.f32 %v1661, %v1671
    %v1674 = vsub.f32 0.0, %v1673
    %v1675 = vmul.f32 %v1674, 1.442695
    %v1676 = vpow.pop %v1675
    %v1677 = vadd.f32 %v1676, 1.0
    %v1678 = vrcp.pop %v1677
    %v1679 = vlaneseq
    %v1680 = vand.u32 %v1679, 127
    %vm1681 = vcmp.eq.s32.totalorder %v1680, 0
    %v1682 = vsel %vm1681, %v1678, %v1673
    %1683 = vst [vmem:[#allocation14] sm:$0xff] %v1682
    // Predicated region
    $region70: #{tpu_custom_call.1} parent=1 // pred_check
      _
    $region71: #{tpu_custom_call.1} parent=1 // pred_check_branch
      %1685 = sbr.rel (0) target = $region73
    $region72: #{tpu_custom_call.1} parent=1 // pred_region
      %s1687 = ssub.s32 128, 128
      %1688 = vsyncadd [#allocation4], %s1687
      %s1690 = sshll.u32 [#allocation14], 4
      %s1691 = int_to_ptr.vmem [resolvable:$true] %s1690
      %1693 = dma.vmem_to_hbm [thread:$0]  %s1691, 128, %s10, [#allocation4]
    $region73: #{tpu_custom_call.1} parent=1 // pred_fallthru
      _
    // Predicated region
    $region74: #{tpu_custom_call.1} parent=1 // pred_check
      _
    $region75: #{tpu_custom_call.1} parent=1 // pred_check_branch
      %1695 = sbr.rel (0) target = $region77
    $region76: #{tpu_custom_call.1} parent=1 // pred_region
      %1696 = dma.done [#allocation4], 128
    $region77: #{tpu_custom_call.1} parent=1 // pred_fallthru
      _
    %1697 = vsyncpa [#allocation3], 1
    %1698 = vsyncpa [#allocation6], 1
    %1699 = vsyncpa [#allocation9], 1
    %1700 = vsyncpa [#allocation12], 1
    %1701 = vsyncpa [#allocation4], 1

</llo_original>
